<compile_context>
chip_gen: v7x
topology: tpu7x:2x2x1
jax: 0.10.0
libtpu: 0.0.40
codegen_flags: <defaults>
</compile_context>

<pallas_src>
import functools
import math

import jax
import jax.numpy as jnp
import numpy as np
from jax import lax
from jax.experimental import pallas as pl
from jax.experimental.pallas import tpu as pltpu


def _round_up(x, m):
    return (x + m - 1) // m * m


def _grouper_kernel(q_ref, pts_ref, src_ref, out_ref, cnt_ref, src0_ref, *,
                    num_slots, c_feat):
    """One (batch, query-tile, point-chunk) grid step.

    q_ref   : (1, 8, TM)       queries, rows [qx, qy, qz, 1, |q|^2 - r^2, 0, 0, 0]
    pts_ref : (1, TN, 8)       point chunk, cols [-2x, -2y, -2z, |x|^2, 1, 0, 0, 0]
    src_ref : (1, C+3, TN)     gather source chunk = [feature ; xyz]
    out_ref : (1, K, C+3, TM)  per-slot gather accumulator (resident across chunks)
    cnt_ref : (1, TM)          running in-radius count (carry across chunks)
    src0_ref: (C+3, 1)         column of global point 0 (empty-ball fallback)
    """
    c_idx = pl.program_id(2)
    tn = pts_ref.shape[1]
    tm = q_ref.shape[2]
    c_all = src_ref.shape[1]

    @pl.when(c_idx == 0)
    def _init():
        cnt_ref[...] = jnp.zeros_like(cnt_ref)
        out_ref[...] = jnp.zeros_like(out_ref)
        src0_ref[...] = src_ref[0, :, 0:1]        # global point 0 lives in chunk 0

    q_blk = q_ref[0]                              # (8, TM)
    pts_blk = pts_ref[0]                          # (TN, 8)
    src_blk = src_ref[0]                          # (C+3, TN)

    # d^2 - r^2 for every (point-in-chunk, query) pair: one small augmented matmul.
    s = jnp.dot(pts_blk, q_blk, preferred_element_type=jnp.float32)   # (TN, TM)
    in_r = s < 0.0

    # Global exclusive running count of in-radius points: strict-lower-triangular bf16
    # matmul (exact 0/1 entries, f32 accumulation) plus the cross-chunk carry.
    row_i = lax.broadcasted_iota(jnp.int32, (tn, tn), 0)
    col_i = lax.broadcasted_iota(jnp.int32, (tn, tn), 1)
    tri = (col_i < row_i).astype(jnp.bfloat16)
    cum = jnp.dot(tri, in_r.astype(jnp.bfloat16),
                  preferred_element_type=jnp.float32) + cnt_ref[...]
    cnt_ref[...] += jnp.sum(in_r.astype(jnp.float32), axis=0, keepdims=True)

    # Neighbour-slot id of every in-radius point; -1 where not in radius.
    slot = jnp.where(in_r, cum, jnp.float32(-1.0))

    # One-hot gather on the MXU, one neighbour slot at a time, at query width TM.
    for k in range(num_slots):
        sel = (slot == jnp.float32(k)).astype(jnp.float32)             # (TN, TM)
        out_ref[0, k, :, :] += jnp.dot(src_blk, sel,
                                       preferred_element_type=jnp.float32)

    # Last chunk: fill slots past the count with the first hit, fall back to point 0
    # for empty balls, and fold the query-centre subtraction into the final write.
    @pl.when(c_idx == pl.num_programs(2) - 1)
    def _finalize():
        cnt = cnt_ref[...]                                             # (1, TM)
        center = q_blk[0:3, :]                                         # (3, TM)
        if c_feat > 0:
            offs = jnp.concatenate(
                [jnp.zeros((c_feat, tm), jnp.float32), center], axis=0)
        else:
            offs = center
        src0 = jnp.broadcast_to(src0_ref[...], (c_all, tm))
        first = jnp.where(cnt == 0.0, src0, out_ref[0, 0, :, :])       # first hit / pt 0
        for k in range(num_slots):
            val = jnp.where(jnp.float32(k) < cnt, out_ref[0, k, :, :], first)
            out_ref[0, k, :, :] = val - offs


def query_grouper(new_xyz, xyz, feature, *, radius, max_neighbors, use_xyz=True,
                  point_chunk=128, max_tile_lanes=2048):
    """Pallas implementation of QueryGrouper.forward.

    new_xyz: (B, 3, M), xyz: (B, 3, N), feature: (B, C, N) or None.
    Returns (group_feature, group_xyz) in the PyTorch layouts:
      group_xyz:     (B, 3, M, K)
      group_feature: (B, C(+3), M, K) if feature is not None else group_xyz
    """
    assert radius > 0.0 and max_neighbors > 0
    new_xyz = jnp.asarray(new_xyz, jnp.float32)
    xyz = jnp.asarray(xyz, jnp.float32)
    B, _, M = new_xyz.shape
    N = xyz.shape[2]
    K = int(max_neighbors)

    c_feat = 0 if feature is None else int(feature.shape[1])
    c_all = c_feat + 3

    # Fused gather source [feature ; xyz] (no dummy feature path, no output concat).
    if feature is None:
        src = xyz
    else:
        src = jnp.concatenate([jnp.asarray(feature, jnp.float32), xyz], axis=1)

    # ---- point chunks streamed over an "arbitrary" grid axis (bounded VMEM) ----
    tn = _round_up(max(int(point_chunk), 128), 128)
    n_pad = _round_up(N, tn)
    n_chunks = n_pad // tn

    # ---- query tiling: K*TM is always a multiple of 128 (lane-dense output) ----
    if M * K <= max_tile_lanes:
        tm = _round_up(M, 128 // math.gcd(K, 128))
        n_mtiles = 1
    else:
        tm = max(128, (max_tile_lanes // K) // 128 * 128)
        n_mtiles = pl.cdiv(M, tm)
    m_pad = n_mtiles * tm

    # Augmented points (B, n_pad, 8): cols [-2x, -2y, -2z, |x|^2, 1, 0, 0, 0];
    # padding rows carry a huge |x|^2 so they never land inside a ball.
    xt = jnp.swapaxes(xyz, 1, 2)                                     # (B, N, 3)
    xx = jnp.sum(xt * xt, axis=2, keepdims=True)                     # (B, N, 1)
    pts_aug = jnp.concatenate(
        [-2.0 * xt, xx, jnp.ones((B, N, 1), jnp.float32),
         jnp.zeros((B, N, 3), jnp.float32)], axis=2)                 # (B, N, 8)
    if n_pad > N:
        pad = jnp.zeros((B, n_pad - N, 8), jnp.float32).at[:, :, 3].set(jnp.float32(3e30))
        pts_aug = jnp.concatenate([pts_aug, pad], axis=1)
        src = jnp.concatenate(
            [src, jnp.zeros((B, c_all, n_pad - N), jnp.float32)], axis=2)

    # Augmented queries (B, 8, m_pad): rows [qx, qy, qz, 1, |q|^2 - r^2, 0, 0, 0];
    # padded query columns are all-zero -> empty ball -> discarded by the final slice.
    qq = jnp.sum(new_xyz * new_xyz, axis=1, keepdims=True)           # (B, 1, M)
    q_aug = jnp.concatenate(
        [new_xyz, jnp.ones((B, 1, M), jnp.float32),
         qq - jnp.float32(radius) * jnp.float32(radius),
         jnp.zeros((B, 3, M), jnp.float32)], axis=1)                 # (B, 8, M)
    if m_pad > M:
        q_aug = jnp.concatenate(
            [q_aug, jnp.zeros((B, 8, m_pad - M), jnp.float32)], axis=2)

    kernel = functools.partial(_grouper_kernel, num_slots=K, c_feat=c_feat)
    out = pl.pallas_call(
        kernel,
        grid=(B, n_mtiles, n_chunks),
        in_specs=[
            pl.BlockSpec((1, 8, tm), lambda b, mt, c: (b, 0, mt)),        # queries
            pl.BlockSpec((1, tn, 8), lambda b, mt, c: (b, c, 0)),         # point chunk
            pl.BlockSpec((1, c_all, tn), lambda b, mt, c: (b, 0, c)),     # gather source
        ],
        out_specs=pl.BlockSpec((1, K, c_all, tm), lambda b, mt, c: (b, 0, 0, mt)),
        out_shape=jax.ShapeDtypeStruct((B, K, c_all, m_pad), jnp.float32),
        scratch_shapes=[pltpu.VMEM((1, tm), jnp.float32),    # running in-radius count
                        pltpu.VMEM((c_all, 1), jnp.float32)],  # global point-0 column
        compiler_params=pltpu.CompilerParams(
            dimension_semantics=("parallel", "parallel", "arbitrary")),
    )(q_aug, pts_aug, src)

    # (B, K, C+3, m_pad) -> (B, C+3, M, K)
    out = jnp.transpose(out, (0, 2, 3, 1))[:, :, :M, :]
    group_xyz = out[:, c_feat:, :, :]
    if feature is None:
        group_feature = group_xyz
    elif use_xyz:
        group_feature = out                       # already [feature ; group_xyz]
    else:
        group_feature = out[:, :c_feat, :, :]
    return group_feature, group_xyz


def _reference(new_xyz, xyz, feature, radius, K, use_xyz):
    """Loop-based numpy reference reproducing the CUDA ball_query / group_points."""
    new_xyz = np.asarray(new_xyz)
    xyz = np.asarray(xyz)
    feature = np.asarray(feature)
    B, _, M = new_xyz.shape
    N = xyz.shape[2]
    idx = np.zeros((B, M, K), dtype=np.int32)
    r2 = radius * radius
    for b in range(B):
        for m in range(M):
            cnt = 0
            for n in range(N):
                d = xyz[b, :, n] - new_xyz[b, :, m]
                d2 = np.float32(d[0] * d[0] + d[1] * d[1] + d[2] * d[2])
                if d2 < r2:
                    if cnt == 0:
                        idx[b, m, :] = n
                    idx[b, m, cnt] = n
                    cnt += 1
                    if cnt >= K:
                        break
    gxyz = np.stack([xyz[b][:, idx[b]] for b in range(B)])       # (B, 3, M, K)
    gxyz = gxyz - new_xyz[..., None]
    gfeat = np.stack([feature[b][:, idx[b]] for b in range(B)])  # (B, C, M, K)
    if use_xyz:
        gfeat = np.concatenate([gfeat, gxyz], axis=1)
    return gfeat, gxyz


if __name__ == "__main__":
    # ---------------- test 1: small shapes, feature + use_xyz ----------------
    B, N, M, C, K = 2, 64, 16, 4, 8
    radius = 0.3

    key = jax.random.PRNGKey(0)
    k_xyz, k_feat, k_xyz2, k_feat2 = jax.random.split(key, 4)
    xyz = jax.random.uniform(k_xyz, (B, 3, N), dtype=jnp.float32)
    new_xyz = xyz[:, :, :M]      # query centres taken from the point set
    feature = jax.random.normal(k_feat, (B, C, N), dtype=jnp.float32)

    gf, gx = query_grouper(new_xyz, xyz, feature,
                           radius=radius, max_neighbors=K, use_xyz=True)
    jax.block_until_ready(gf)
    jax.block_until_ready(gx)
    ref_f, ref_x = _reference(new_xyz, xyz, feature, radius, K, True)
    np.testing.assert_allclose(np.asarray(gx), ref_x, atol=1e-5, rtol=1e-5)
    np.testing.assert_allclose(np.asarray(gf), ref_f, atol=1e-5, rtol=1e-5)
    assert gf.shape == (B, C + 3, M, K) and gx.shape == (B, 3, M, K)

    # ---------------- test 2: feature=None path (group_feature is group_xyz) ----------------
    gf2, gx2 = query_grouper(new_xyz, xyz, None,
                             radius=radius, max_neighbors=K, use_xyz=True)
    jax.block_until_ready(gf2)
    np.testing.assert_allclose(np.asarray(gx2), ref_x, atol=1e-5, rtol=1e-5)
    np.testing.assert_allclose(np.asarray(gf2), ref_x, atol=1e-5, rtol=1e-5)

    # ---------------- test 3: empty-ball fallback (index 0) ----------------
    new_xyz_far = new_xyz + jnp.float32(10.0)
    gf3, gx3 = query_grouper(new_xyz_far, xyz, feature,
                             radius=radius, max_neighbors=K, use_xyz=True)
    jax.block_until_ready(gf3)
    ref_f3, ref_x3 = _reference(new_xyz_far, xyz, feature, radius, K, True)
    np.testing.assert_allclose(np.asarray(gx3), ref_x3, atol=1e-5, rtol=1e-5)
    np.testing.assert_allclose(np.asarray(gf3), ref_f3, atol=1e-5, rtol=1e-5)

    # ------- test 4: multi point-chunk + multi query-tile + use_xyz=False -------
    B2, N2, M2, C2, K2 = 1, 300, 272, 5, 8
    radius2 = 0.25
    xyz2 = jax.random.uniform(k_xyz2, (B2, 3, N2), dtype=jnp.float32)
    new_xyz2 = xyz2[:, :, :M2]
    feature2 = jax.random.normal(k_feat2, (B2, C2, N2), dtype=jnp.float32)

    gf4, gx4 = query_grouper(new_xyz2, xyz2, feature2,
                             radius=radius2, max_neighbors=K2, use_xyz=False)
    jax.block_until_ready(gf4)
    ref_f4, ref_x4 = _reference(new_xyz2, xyz2, feature2, radius2, K2, False)
    np.testing.assert_allclose(np.asarray(gx4), ref_x4, atol=1e-5, rtol=1e-5)
    np.testing.assert_allclose(np.asarray(gf4), ref_f4, atol=1e-5, rtol=1e-5)
    assert gf4.shape == (B2, C2, M2, K2) and gx4.shape == (B2, 3, M2, K2)

    print("KERNEL_OK")
</pallas_src>

<mosaic_0001>
module attributes {stable_mosaic.version = 11 : i64} {
  func.func @_grouper_kernel(%arg0: i32, %arg1: i32, %arg2: i32, %arg3: memref<1x8x16xf32, #tpu.memory_space<vmem>>, %arg4: memref<1x128x8xf32, #tpu.memory_space<vmem>>, %arg5: memref<1x7x128xf32, #tpu.memory_space<vmem>>, %arg6: memref<1x8x7x16xf32, #tpu.memory_space<vmem>>, %arg7: memref<1x16xf32, #tpu.memory_space<vmem>>, %arg8: memref<7x1xf32, #tpu.memory_space<vmem>>) attributes {dimension_semantics = [#tpu.dimension_semantics<parallel>, #tpu.dimension_semantics<parallel>, #tpu.dimension_semantics<arbitrary>], iteration_bounds = array<i64: 2, 1, 1>, scalar_prefetch = 0 : i64, scratch_operands = 2 : i64, tpu.core_type = #tpu.core_type<tc>, window_params = [{transform_indices = @transform_0, window_bounds = array<i64: 1, 8, 16>}, {transform_indices = @transform_1, window_bounds = array<i64: 1, 128, 8>}, {transform_indices = @transform_2, window_bounds = array<i64: 1, 7, 128>}, {transform_indices = @transform_3, window_bounds = array<i64: 1, 8, 7, 16>}]} {
    %c0_i32 = arith.constant 0 : i32
    %0 = arith.cmpi eq, %arg2, %c0_i32 : i32
    %1 = arith.extui %0 : i1 to i32
    %c0_i32_0 = arith.constant 0 : i32
    %2 = arith.cmpi ne, %1, %c0_i32_0 : i32
    scf.if %2 {
      %cst_94 = arith.constant 0.000000e+00 : f32
      %125 = vector.broadcast %cst_94 : f32 to vector<1x16xf32>
      %c0_95 = arith.constant 0 : index
      %c0_96 = arith.constant 0 : index
      %126 = vector.load %arg7[%c0_95, %c0_96] : memref<1x16xf32, #tpu.memory_space<vmem>>, vector<1x16xf32>
      tpu.vector_store %arg7[%c0_95, %c0_96], %125 {strides = array<i32>} : memref<1x16xf32, #tpu.memory_space<vmem>>, vector<1x16xf32>,
      %cst_97 = arith.constant 0.000000e+00 : f32
      %127 = vector.broadcast %cst_97 : f32 to vector<1x8x7x16xf32>
      %c0_98 = arith.constant 0 : index
      %c0_99 = arith.constant 0 : index
      %c0_100 = arith.constant 0 : index
      %c0_101 = arith.constant 0 : index
      %128 = vector.load %arg6[%c0_98, %c0_99, %c0_100, %c0_101] : memref<1x8x7x16xf32, #tpu.memory_space<vmem>>, vector<1x8x7x16xf32>
      tpu.vector_store %arg6[%c0_98, %c0_99, %c0_100, %c0_101], %127 {strides = array<i32>} : memref<1x8x7x16xf32, #tpu.memory_space<vmem>>, vector<1x8x7x16xf32>,
      %c0_102 = arith.constant 0 : index
      %c0_103 = arith.constant 0 : index
      %c0_104 = arith.constant 0 : index
      %129 = vector.load %arg5[%c0_102, %c0_103, %c0_104] : memref<1x7x128xf32, #tpu.memory_space<vmem>>, vector<1x7x1xf32>
      %130 = vector.shape_cast %129 : vector<1x7x1xf32> to vector<7x1xf32>
      %c0_105 = arith.constant 0 : index
      %c0_106 = arith.constant 0 : index
      %131 = vector.load %arg8[%c0_105, %c0_106] : memref<7x1xf32, #tpu.memory_space<vmem>>, vector<7x1xf32>
      tpu.vector_store %arg8[%c0_105, %c0_106], %130 {strides = array<i32>} : memref<7x1xf32, #tpu.memory_space<vmem>>, vector<7x1xf32>,
    } else {
    }
    %c0 = arith.constant 0 : index
    %c0_1 = arith.constant 0 : index
    %c0_2 = arith.constant 0 : index
    %3 = vector.load %arg3[%c0, %c0_1, %c0_2] : memref<1x8x16xf32, #tpu.memory_space<vmem>>, vector<1x8x16xf32>
    %4 = vector.shape_cast %3 : vector<1x8x16xf32> to vector<8x16xf32>
    %c0_3 = arith.constant 0 : index
    %c0_4 = arith.constant 0 : index
    %c0_5 = arith.constant 0 : index
    %5 = vector.load %arg4[%c0_3, %c0_4, %c0_5] : memref<1x128x8xf32, #tpu.memory_space<vmem>>, vector<1x128x8xf32>
    %6 = vector.shape_cast %5 : vector<1x128x8xf32> to vector<128x8xf32>
    %c0_6 = arith.constant 0 : index
    %c0_7 = arith.constant 0 : index
    %c0_8 = arith.constant 0 : index
    %7 = vector.load %arg5[%c0_6, %c0_7, %c0_8] : memref<1x7x128xf32, #tpu.memory_space<vmem>>, vector<1x7x128xf32>
    %8 = vector.shape_cast %7 : vector<1x7x128xf32> to vector<7x128xf32>
    %cst = arith.constant dense<0.000000e+00> : vector<128x16xf32>
    %9 = tpu.matmul %6, %4, %cst {dimension_numbers = #tpu.dot_dimension_numbers<[1], [0], [0], [1], [0, 0, 1, 1], [], []>} : vector<128x8xf32>, vector<8x16xf32>, vector<128x16xf32> -> vector<128x16xf32>
    %cst_9 = arith.constant 0.000000e+00 : f32
    %10 = vector.broadcast %cst_9 : f32 to vector<128x16xf32>
    %11 = arith.cmpf olt, %9, %10 : vector<128x16xf32>
    %12 = tpu.iota {dimensions = array<i32: 0>} : vector<128x128xi32>
    %13 = tpu.iota {dimensions = array<i32: 1>} : vector<128x128xi32>
    %14 = arith.cmpi slt, %13, %12 : vector<128x128xi32>
    %15 = arith.extui %14 : vector<128x128xi1> to vector<128x128xi32>
    %16 = arith.sitofp %15 : vector<128x128xi32> to vector<128x128xf32>
    %17 = arith.truncf %16 : vector<128x128xf32> to vector<128x128xbf16>
    %18 = arith.extui %11 : vector<128x16xi1> to vector<128x16xi32>
    %19 = arith.sitofp %18 : vector<128x16xi32> to vector<128x16xf32>
    %20 = arith.truncf %19 : vector<128x16xf32> to vector<128x16xbf16>
    %cst_10 = arith.constant dense<0.000000e+00> : vector<128x16xf32>
    %21 = tpu.matmul %17, %20, %cst_10 {dimension_numbers = #tpu.dot_dimension_numbers<[1], [0], [0], [1], [0, 0, 1, 1], [], []>} : vector<128x128xbf16>, vector<128x16xbf16>, vector<128x16xf32> -> vector<128x16xf32>
    %c0_11 = arith.constant 0 : index
    %c0_12 = arith.constant 0 : index
    %22 = vector.load %arg7[%c0_11, %c0_12] : memref<1x16xf32, #tpu.memory_space<vmem>>, vector<1x16xf32>
    %23 = vector.broadcast %22 : vector<1x16xf32> to vector<128x16xf32>
    %24 = arith.addf %21, %23 : vector<128x16xf32>
    %c0_13 = arith.constant 0 : index
    %c0_14 = arith.constant 0 : index
    %25 = vector.load %arg7[%c0_13, %c0_14] : memref<1x16xf32, #tpu.memory_space<vmem>>, vector<1x16xf32>
    %26 = arith.extui %11 : vector<128x16xi1> to vector<128x16xi32>
    %27 = arith.sitofp %26 : vector<128x16xi32> to vector<128x16xf32>
    %cst_15 = arith.constant dense<0.000000e+00> : vector<16xf32>
    %28 = vector.multi_reduction <add>, %27, %cst_15 [0] : vector<128x16xf32> to vector<16xf32>
    %29 = vector.shape_cast %28 : vector<16xf32> to vector<1x16xf32>
    %30 = arith.addf %25, %29 : vector<1x16xf32>
    %c0_16 = arith.constant 0 : index
    %c0_17 = arith.constant 0 : index
    %31 = vector.load %arg7[%c0_16, %c0_17] : memref<1x16xf32, #tpu.memory_space<vmem>>, vector<1x16xf32>
    tpu.vector_store %arg7[%c0_16, %c0_17], %30 {strides = array<i32>} : memref<1x16xf32, #tpu.memory_space<vmem>>, vector<1x16xf32>,
    %cst_18 = arith.constant -1.000000e+00 : f32
    %32 = vector.broadcast %cst_18 : f32 to vector<128x16xf32>
    %33 = arith.select %11, %24, %32 : vector<128x16xi1>, vector<128x16xf32>
    %cst_19 = arith.constant 0.000000e+00 : f32
    %34 = vector.broadcast %cst_19 : f32 to vector<128x16xf32>
    %35 = arith.cmpf oeq, %33, %34 : vector<128x16xf32>
    %36 = arith.extui %35 : vector<128x16xi1> to vector<128x16xi32>
    %37 = arith.sitofp %36 : vector<128x16xi32> to vector<128x16xf32>
    %c0_20 = arith.constant 0 : index
    %c0_21 = arith.constant 0 : index
    %c0_22 = arith.constant 0 : index
    %c0_23 = arith.constant 0 : index
    %38 = vector.load %arg6[%c0_20, %c0_21, %c0_22, %c0_23] : memref<1x8x7x16xf32, #tpu.memory_space<vmem>>, vector<1x1x7x16xf32>
    %39 = vector.shape_cast %38 : vector<1x1x7x16xf32> to vector<7x16xf32>
    %cst_24 = arith.constant dense<0.000000e+00> : vector<7x16xf32>
    %40 = tpu.matmul %8, %37, %cst_24 {dimension_numbers = #tpu.dot_dimension_numbers<[1], [0], [0], [1], [0, 0, 1, 1], [], []>} : vector<7x128xf32>, vector<128x16xf32>, vector<7x16xf32> -> vector<7x16xf32>
    %41 = arith.addf %39, %40 : vector<7x16xf32>
    %c0_25 = arith.constant 0 : index
    %c0_26 = arith.constant 0 : index
    %c0_27 = arith.constant 0 : index
    %c0_28 = arith.constant 0 : index
    %42 = vector.load %arg6[%c0_25, %c0_26, %c0_27, %c0_28] : memref<1x8x7x16xf32, #tpu.memory_space<vmem>>, vector<1x1x7x16xf32>
    %43 = vector.shape_cast %42 : vector<1x1x7x16xf32> to vector<7x16xf32>
    %44 = vector.shape_cast %41 : vector<7x16xf32> to vector<1x1x7x16xf32>
    tpu.vector_store %arg6[%c0_25, %c0_26, %c0_27, %c0_28], %44 {strides = array<i32>} : memref<1x8x7x16xf32, #tpu.memory_space<vmem>>, vector<1x1x7x16xf32>,
    %cst_29 = arith.constant 1.000000e+00 : f32
    %45 = vector.broadcast %cst_29 : f32 to vector<128x16xf32>
    %46 = arith.cmpf oeq, %33, %45 : vector<128x16xf32>
    %47 = arith.extui %46 : vector<128x16xi1> to vector<128x16xi32>
    %48 = arith.sitofp %47 : vector<128x16xi32> to vector<128x16xf32>
    %c0_30 = arith.constant 0 : index
    %c1 = arith.constant 1 : index
    %c0_31 = arith.constant 0 : index
    %c0_32 = arith.constant 0 : index
    %49 = vector.load %arg6[%c0_30, %c1, %c0_31, %c0_32] : memref<1x8x7x16xf32, #tpu.memory_space<vmem>>, vector<1x1x7x16xf32>
    %50 = vector.shape_cast %49 : vector<1x1x7x16xf32> to vector<7x16xf32>
    %cst_33 = arith.constant dense<0.000000e+00> : vector<7x16xf32>
    %51 = tpu.matmul %8, %48, %cst_33 {dimension_numbers = #tpu.dot_dimension_numbers<[1], [0], [0], [1], [0, 0, 1, 1], [], []>} : vector<7x128xf32>, vector<128x16xf32>, vector<7x16xf32> -> vector<7x16xf32>
    %52 = arith.addf %50, %51 : vector<7x16xf32>
    %c0_34 = arith.constant 0 : index
    %c1_35 = arith.constant 1 : index
    %c0_36 = arith.constant 0 : index
    %c0_37 = arith.constant 0 : index
    %53 = vector.load %arg6[%c0_34, %c1_35, %c0_36, %c0_37] : memref<1x8x7x16xf32, #tpu.memory_space<vmem>>, vector<1x1x7x16xf32>
    %54 = vector.shape_cast %53 : vector<1x1x7x16xf32> to vector<7x16xf32>
    %55 = vector.shape_cast %52 : vector<7x16xf32> to vector<1x1x7x16xf32>
    tpu.vector_store %arg6[%c0_34, %c1_35, %c0_36, %c0_37], %55 {strides = array<i32>} : memref<1x8x7x16xf32, #tpu.memory_space<vmem>>, vector<1x1x7x16xf32>,
    %cst_38 = arith.constant 2.000000e+00 : f32
    %56 = vector.broadcast %cst_38 : f32 to vector<128x16xf32>
    %57 = arith.cmpf oeq, %33, %56 : vector<128x16xf32>
    %58 = arith.extui %57 : vector<128x16xi1> to vector<128x16xi32>
    %59 = arith.sitofp %58 : vector<128x16xi32> to vector<128x16xf32>
    %c0_39 = arith.constant 0 : index
    %c2 = arith.constant 2 : index
    %c0_40 = arith.constant 0 : index
    %c0_41 = arith.constant 0 : index
    %60 = vector.load %arg6[%c0_39, %c2, %c0_40, %c0_41] : memref<1x8x7x16xf32, #tpu.memory_space<vmem>>, vector<1x1x7x16xf32>
    %61 = vector.shape_cast %60 : vector<1x1x7x16xf32> to vector<7x16xf32>
    %cst_42 = arith.constant dense<0.000000e+00> : vector<7x16xf32>
    %62 = tpu.matmul %8, %59, %cst_42 {dimension_numbers = #tpu.dot_dimension_numbers<[1], [0], [0], [1], [0, 0, 1, 1], [], []>} : vector<7x128xf32>, vector<128x16xf32>, vector<7x16xf32> -> vector<7x16xf32>
    %63 = arith.addf %61, %62 : vector<7x16xf32>
    %c0_43 = arith.constant 0 : index
    %c2_44 = arith.constant 2 : index
    %c0_45 = arith.constant 0 : index
    %c0_46 = arith.constant 0 : index
    %64 = vector.load %arg6[%c0_43, %c2_44, %c0_45, %c0_46] : memref<1x8x7x16xf32, #tpu.memory_space<vmem>>, vector<1x1x7x16xf32>
    %65 = vector.shape_cast %64 : vector<1x1x7x16xf32> to vector<7x16xf32>
    %66 = vector.shape_cast %63 : vector<7x16xf32> to vector<1x1x7x16xf32>
    tpu.vector_store %arg6[%c0_43, %c2_44, %c0_45, %c0_46], %66 {strides = array<i32>} : memref<1x8x7x16xf32, #tpu.memory_space<vmem>>, vector<1x1x7x16xf32>,
    %cst_47 = arith.constant 3.000000e+00 : f32
    %67 = vector.broadcast %cst_47 : f32 to vector<128x16xf32>
    %68 = arith.cmpf oeq, %33, %67 : vector<128x16xf32>
    %69 = arith.extui %68 : vector<128x16xi1> to vector<128x16xi32>
    %70 = arith.sitofp %69 : vector<128x16xi32> to vector<128x16xf32>
    %c0_48 = arith.constant 0 : index
    %c3 = arith.constant 3 : index
    %c0_49 = arith.constant 0 : index
    %c0_50 = arith.constant 0 : index
    %71 = vector.load %arg6[%c0_48, %c3, %c0_49, %c0_50] : memref<1x8x7x16xf32, #tpu.memory_space<vmem>>, vector<1x1x7x16xf32>
    %72 = vector.shape_cast %71 : vector<1x1x7x16xf32> to vector<7x16xf32>
    %cst_51 = arith.constant dense<0.000000e+00> : vector<7x16xf32>
    %73 = tpu.matmul %8, %70, %cst_51 {dimension_numbers = #tpu.dot_dimension_numbers<[1], [0], [0], [1], [0, 0, 1, 1], [], []>} : vector<7x128xf32>, vector<128x16xf32>, vector<7x16xf32> -> vector<7x16xf32>
    %74 = arith.addf %72, %73 : vector<7x16xf32>
    %c0_52 = arith.constant 0 : index
    %c3_53 = arith.constant 3 : index
    %c0_54 = arith.constant 0 : index
    %c0_55 = arith.constant 0 : index
    %75 = vector.load %arg6[%c0_52, %c3_53, %c0_54, %c0_55] : memref<1x8x7x16xf32, #tpu.memory_space<vmem>>, vector<1x1x7x16xf32>
    %76 = vector.shape_cast %75 : vector<1x1x7x16xf32> to vector<7x16xf32>
    %77 = vector.shape_cast %74 : vector<7x16xf32> to vector<1x1x7x16xf32>
    tpu.vector_store %arg6[%c0_52, %c3_53, %c0_54, %c0_55], %77 {strides = array<i32>} : memref<1x8x7x16xf32, #tpu.memory_space<vmem>>, vector<1x1x7x16xf32>,
    %cst_56 = arith.constant 4.000000e+00 : f32
    %78 = vector.broadcast %cst_56 : f32 to vector<128x16xf32>
    %79 = arith.cmpf oeq, %33, %78 : vector<128x16xf32>
    %80 = arith.extui %79 : vector<128x16xi1> to vector<128x16xi32>
    %81 = arith.sitofp %80 : vector<128x16xi32> to vector<128x16xf32>
    %c0_57 = arith.constant 0 : index
    %c4 = arith.constant 4 : index
    %c0_58 = arith.constant 0 : index
    %c0_59 = arith.constant 0 : index
    %82 = vector.load %arg6[%c0_57, %c4, %c0_58, %c0_59] : memref<1x8x7x16xf32, #tpu.memory_space<vmem>>, vector<1x1x7x16xf32>
    %83 = vector.shape_cast %82 : vector<1x1x7x16xf32> to vector<7x16xf32>
    %cst_60 = arith.constant dense<0.000000e+00> : vector<7x16xf32>
    %84 = tpu.matmul %8, %81, %cst_60 {dimension_numbers = #tpu.dot_dimension_numbers<[1], [0], [0], [1], [0, 0, 1, 1], [], []>} : vector<7x128xf32>, vector<128x16xf32>, vector<7x16xf32> -> vector<7x16xf32>
    %85 = arith.addf %83, %84 : vector<7x16xf32>
    %c0_61 = arith.constant 0 : index
    %c4_62 = arith.constant 4 : index
    %c0_63 = arith.constant 0 : index
    %c0_64 = arith.constant 0 : index
    %86 = vector.load %arg6[%c0_61, %c4_62, %c0_63, %c0_64] : memref<1x8x7x16xf32, #tpu.memory_space<vmem>>, vector<1x1x7x16xf32>
    %87 = vector.shape_cast %86 : vector<1x1x7x16xf32> to vector<7x16xf32>
    %88 = vector.shape_cast %85 : vector<7x16xf32> to vector<1x1x7x16xf32>
    tpu.vector_store %arg6[%c0_61, %c4_62, %c0_63, %c0_64], %88 {strides = array<i32>} : memref<1x8x7x16xf32, #tpu.memory_space<vmem>>, vector<1x1x7x16xf32>,
    %cst_65 = arith.constant 5.000000e+00 : f32
    %89 = vector.broadcast %cst_65 : f32 to vector<128x16xf32>
    %90 = arith.cmpf oeq, %33, %89 : vector<128x16xf32>
    %91 = arith.extui %90 : vector<128x16xi1> to vector<128x16xi32>
    %92 = arith.sitofp %91 : vector<128x16xi32> to vector<128x16xf32>
    %c0_66 = arith.constant 0 : index
    %c5 = arith.constant 5 : index
    %c0_67 = arith.constant 0 : index
    %c0_68 = arith.constant 0 : index
    %93 = vector.load %arg6[%c0_66, %c5, %c0_67, %c0_68] : memref<1x8x7x16xf32, #tpu.memory_space<vmem>>, vector<1x1x7x16xf32>
    %94 = vector.shape_cast %93 : vector<1x1x7x16xf32> to vector<7x16xf32>
    %cst_69 = arith.constant dense<0.000000e+00> : vector<7x16xf32>
    %95 = tpu.matmul %8, %92, %cst_69 {dimension_numbers = #tpu.dot_dimension_numbers<[1], [0], [0], [1], [0, 0, 1, 1], [], []>} : vector<7x128xf32>, vector<128x16xf32>, vector<7x16xf32> -> vector<7x16xf32>
    %96 = arith.addf %94, %95 : vector<7x16xf32>
    %c0_70 = arith.constant 0 : index
    %c5_71 = arith.constant 5 : index
    %c0_72 = arith.constant 0 : index
    %c0_73 = arith.constant 0 : index
    %97 = vector.load %arg6[%c0_70, %c5_71, %c0_72, %c0_73] : memref<1x8x7x16xf32, #tpu.memory_space<vmem>>, vector<1x1x7x16xf32>
    %98 = vector.shape_cast %97 : vector<1x1x7x16xf32> to vector<7x16xf32>
    %99 = vector.shape_cast %96 : vector<7x16xf32> to vector<1x1x7x16xf32>
    tpu.vector_store %arg6[%c0_70, %c5_71, %c0_72, %c0_73], %99 {strides = array<i32>} : memref<1x8x7x16xf32, #tpu.memory_space<vmem>>, vector<1x1x7x16xf32>,
    %cst_74 = arith.constant 6.000000e+00 : f32
    %100 = vector.broadcast %cst_74 : f32 to vector<128x16xf32>
    %101 = arith.cmpf oeq, %33, %100 : vector<128x16xf32>
    %102 = arith.extui %101 : vector<128x16xi1> to vector<128x16xi32>
    %103 = arith.sitofp %102 : vector<128x16xi32> to vector<128x16xf32>
    %c0_75 = arith.constant 0 : index
    %c6 = arith.constant 6 : index
    %c0_76 = arith.constant 0 : index
    %c0_77 = arith.constant 0 : index
    %104 = vector.load %arg6[%c0_75, %c6, %c0_76, %c0_77] : memref<1x8x7x16xf32, #tpu.memory_space<vmem>>, vector<1x1x7x16xf32>
    %105 = vector.shape_cast %104 : vector<1x1x7x16xf32> to vector<7x16xf32>
    %cst_78 = arith.constant dense<0.000000e+00> : vector<7x16xf32>
    %106 = tpu.matmul %8, %103, %cst_78 {dimension_numbers = #tpu.dot_dimension_numbers<[1], [0], [0], [1], [0, 0, 1, 1], [], []>} : vector<7x128xf32>, vector<128x16xf32>, vector<7x16xf32> -> vector<7x16xf32>
    %107 = arith.addf %105, %106 : vector<7x16xf32>
    %c0_79 = arith.constant 0 : index
    %c6_80 = arith.constant 6 : index
    %c0_81 = arith.constant 0 : index
    %c0_82 = arith.constant 0 : index
    %108 = vector.load %arg6[%c0_79, %c6_80, %c0_81, %c0_82] : memref<1x8x7x16xf32, #tpu.memory_space<vmem>>, vector<1x1x7x16xf32>
    %109 = vector.shape_cast %108 : vector<1x1x7x16xf32> to vector<7x16xf32>
    %110 = vector.shape_cast %107 : vector<7x16xf32> to vector<1x1x7x16xf32>
    tpu.vector_store %arg6[%c0_79, %c6_80, %c0_81, %c0_82], %110 {strides = array<i32>} : memref<1x8x7x16xf32, #tpu.memory_space<vmem>>, vector<1x1x7x16xf32>,
    %cst_83 = arith.constant 7.000000e+00 : f32
    %111 = vector.broadcast %cst_83 : f32 to vector<128x16xf32>
    %112 = arith.cmpf oeq, %33, %111 : vector<128x16xf32>
    %113 = arith.extui %112 : vector<128x16xi1> to vector<128x16xi32>
    %114 = arith.sitofp %113 : vector<128x16xi32> to vector<128x16xf32>
    %c0_84 = arith.constant 0 : index
    %c7 = arith.constant 7 : index
    %c0_85 = arith.constant 0 : index
    %c0_86 = arith.constant 0 : index
    %115 = vector.load %arg6[%c0_84, %c7, %c0_85, %c0_86] : memref<1x8x7x16xf32, #tpu.memory_space<vmem>>, vector<1x1x7x16xf32>
    %116 = vector.shape_cast %115 : vector<1x1x7x16xf32> to vector<7x16xf32>
    %cst_87 = arith.constant dense<0.000000e+00> : vector<7x16xf32>
    %117 = tpu.matmul %8, %114, %cst_87 {dimension_numbers = #tpu.dot_dimension_numbers<[1], [0], [0], [1], [0, 0, 1, 1], [], []>} : vector<7x128xf32>, vector<128x16xf32>, vector<7x16xf32> -> vector<7x16xf32>
    %118 = arith.addf %116, %117 : vector<7x16xf32>
    %c0_88 = arith.constant 0 : index
    %c7_89 = arith.constant 7 : index
    %c0_90 = arith.constant 0 : index
    %c0_91 = arith.constant 0 : index
    %119 = vector.load %arg6[%c0_88, %c7_89, %c0_90, %c0_91] : memref<1x8x7x16xf32, #tpu.memory_space<vmem>>, vector<1x1x7x16xf32>
    %120 = vector.shape_cast %119 : vector<1x1x7x16xf32> to vector<7x16xf32>
    %121 = vector.shape_cast %118 : vector<7x16xf32> to vector<1x1x7x16xf32>
    tpu.vector_store %arg6[%c0_88, %c7_89, %c0_90, %c0_91], %121 {strides = array<i32>} : memref<1x8x7x16xf32, #tpu.memory_space<vmem>>, vector<1x1x7x16xf32>,
    %c0_i32_92 = arith.constant 0 : i32
    %122 = arith.cmpi eq, %arg2, %c0_i32_92 : i32
    %123 = arith.extui %122 : i1 to i32
    %c0_i32_93 = arith.constant 0 : i32
    %124 = arith.cmpi ne, %123, %c0_i32_93 : i32
    scf.if %124 {
      %c0_94 = arith.constant 0 : index
      %c0_95 = arith.constant 0 : index
      %125 = vector.load %arg7[%c0_94, %c0_95] : memref<1x16xf32, #tpu.memory_space<vmem>>, vector<1x16xf32>
      %126 = vector.extract_strided_slice %4 {offsets = [0, 0], sizes = [3, 16], strides = [1, 1]} : vector<8x16xf32> to vector<3x16xf32>
      %cst_96 = arith.constant 0.000000e+00 : f32
      %127 = vector.broadcast %cst_96 : f32 to vector<4x16xf32>
      %128 = tpu.concatenate %127, %126 in 0 : vector<4x16xf32>, vector<3x16xf32> -> vector<7x16xf32>
      %c0_97 = arith.constant 0 : index
      %c0_98 = arith.constant 0 : index
      %129 = vector.load %arg8[%c0_97, %c0_98] : memref<7x1xf32, #tpu.memory_space<vmem>>, vector<7x1xf32>
      %130 = vector.shape_cast %129 : vector<7x1xf32> to vector<7x1xf32>
      %131 = vector.broadcast %130 : vector<7x1xf32> to vector<7x16xf32>
      %cst_99 = arith.constant 0.000000e+00 : f32
      %132 = vector.broadcast %cst_99 : f32 to vector<1x16xf32>
      %133 = arith.cmpf oeq, %125, %132 : vector<1x16xf32>
      %c0_100 = arith.constant 0 : index
      %c0_101 = arith.constant 0 : index
      %c0_102 = arith.constant 0 : index
      %c0_103 = arith.constant 0 : index
      %134 = vector.load %arg6[%c0_100, %c0_101, %c0_102, %c0_103] : memref<1x8x7x16xf32, #tpu.memory_space<vmem>>, vector<1x1x7x16xf32>
      %135 = vector.shape_cast %134 : vector<1x1x7x16xf32> to vector<7x16xf32>
      %136 = vector.shape_cast %133 : vector<1x16xi1> to vector<1x16xi1>
      %137 = vector.broadcast %136 : vector<1x16xi1> to vector<7x16xi1>
      %138 = arith.select %137, %131, %135 : vector<7x16xi1>, vector<7x16xf32>
      %cst_104 = arith.constant 0.000000e+00 : f32
      %139 = vector.broadcast %cst_104 : f32 to vector<1x16xf32>
      %140 = arith.cmpf olt, %139, %125 : vector<1x16xf32>
      %c0_105 = arith.constant 0 : index
      %c0_106 = arith.constant 0 : index
      %c0_107 = arith.constant 0 : index
      %c0_108 = arith.constant 0 : index
      %141 = vector.load %arg6[%c0_105, %c0_106, %c0_107, %c0_108] : memref<1x8x7x16xf32, #tpu.memory_space<vmem>>, vector<1x1x7x16xf32>
      %142 = vector.shape_cast %141 : vector<1x1x7x16xf32> to vector<7x16xf32>
      %143 = vector.shape_cast %140 : vector<1x16xi1> to vector<1x16xi1>
      %144 = vector.broadcast %143 : vector<1x16xi1> to vector<7x16xi1>
      %145 = arith.select %144, %142, %138 : vector<7x16xi1>, vector<7x16xf32>
      %146 = arith.subf %145, %128 : vector<7x16xf32>
      %c0_109 = arith.constant 0 : index
      %c0_110 = arith.constant 0 : index
      %c0_111 = arith.constant 0 : index
      %c0_112 = arith.constant 0 : index
      %147 = vector.load %arg6[%c0_109, %c0_110, %c0_111, %c0_112] : memref<1x8x7x16xf32, #tpu.memory_space<vmem>>, vector<1x1x7x16xf32>
      %148 = vector.shape_cast %147 : vector<1x1x7x16xf32> to vector<7x16xf32>
      %149 = vector.shape_cast %146 : vector<7x16xf32> to vector<1x1x7x16xf32>
      tpu.vector_store %arg6[%c0_109, %c0_110, %c0_111, %c0_112], %149 {strides = array<i32>} : memref<1x8x7x16xf32, #tpu.memory_space<vmem>>, vector<1x1x7x16xf32>,
      %cst_113 = arith.constant 1.000000e+00 : f32
      %150 = vector.broadcast %cst_113 : f32 to vector<1x16xf32>
      %151 = arith.cmpf olt, %150, %125 : vector<1x16xf32>
      %c0_114 = arith.constant 0 : index
      %c1_115 = arith.constant 1 : index
      %c0_116 = arith.constant 0 : index
      %c0_117 = arith.constant 0 : index
      %152 = vector.load %arg6[%c0_114, %c1_115, %c0_116, %c0_117] : memref<1x8x7x16xf32, #tpu.memory_space<vmem>>, vector<1x1x7x16xf32>
      %153 = vector.shape_cast %152 : vector<1x1x7x16xf32> to vector<7x16xf32>
      %154 = vector.shape_cast %151 : vector<1x16xi1> to vector<1x16xi1>
      %155 = vector.broadcast %154 : vector<1x16xi1> to vector<7x16xi1>
      %156 = arith.select %155, %153, %138 : vector<7x16xi1>, vector<7x16xf32>
      %157 = arith.subf %156, %128 : vector<7x16xf32>
      %c0_118 = arith.constant 0 : index
      %c1_119 = arith.constant 1 : index
      %c0_120 = arith.constant 0 : index
      %c0_121 = arith.constant 0 : index
      %158 = vector.load %arg6[%c0_118, %c1_119, %c0_120, %c0_121] : memref<1x8x7x16xf32, #tpu.memory_space<vmem>>, vector<1x1x7x16xf32>
      %159 = vector.shape_cast %158 : vector<1x1x7x16xf32> to vector<7x16xf32>
      %160 = vector.shape_cast %157 : vector<7x16xf32> to vector<1x1x7x16xf32>
      tpu.vector_store %arg6[%c0_118, %c1_119, %c0_120, %c0_121], %160 {strides = array<i32>} : memref<1x8x7x16xf32, #tpu.memory_space<vmem>>, vector<1x1x7x16xf32>,
      %cst_122 = arith.constant 2.000000e+00 : f32
      %161 = vector.broadcast %cst_122 : f32 to vector<1x16xf32>
      %162 = arith.cmpf olt, %161, %125 : vector<1x16xf32>
      %c0_123 = arith.constant 0 : index
      %c2_124 = arith.constant 2 : index
      %c0_125 = arith.constant 0 : index
      %c0_126 = arith.constant 0 : index
      %163 = vector.load %arg6[%c0_123, %c2_124, %c0_125, %c0_126] : memref<1x8x7x16xf32, #tpu.memory_space<vmem>>, vector<1x1x7x16xf32>
      %164 = vector.shape_cast %163 : vector<1x1x7x16xf32> to vector<7x16xf32>
      %165 = vector.shape_cast %162 : vector<1x16xi1> to vector<1x16xi1>
      %166 = vector.broadcast %165 : vector<1x16xi1> to vector<7x16xi1>
      %167 = arith.select %166, %164, %138 : vector<7x16xi1>, vector<7x16xf32>
      %168 = arith.subf %167, %128 : vector<7x16xf32>
      %c0_127 = arith.constant 0 : index
      %c2_128 = arith.constant 2 : index
      %c0_129 = arith.constant 0 : index
      %c0_130 = arith.constant 0 : index
      %169 = vector.load %arg6[%c0_127, %c2_128, %c0_129, %c0_130] : memref<1x8x7x16xf32, #tpu.memory_space<vmem>>, vector<1x1x7x16xf32>
      %170 = vector.shape_cast %169 : vector<1x1x7x16xf32> to vector<7x16xf32>
      %171 = vector.shape_cast %168 : vector<7x16xf32> to vector<1x1x7x16xf32>
      tpu.vector_store %arg6[%c0_127, %c2_128, %c0_129, %c0_130], %171 {strides = array<i32>} : memref<1x8x7x16xf32, #tpu.memory_space<vmem>>, vector<1x1x7x16xf32>,
      %cst_131 = arith.constant 3.000000e+00 : f32
      %172 = vector.broadcast %cst_131 : f32 to vector<1x16xf32>
      %173 = arith.cmpf olt, %172, %125 : vector<1x16xf32>
      %c0_132 = arith.constant 0 : index
      %c3_133 = arith.constant 3 : index
      %c0_134 = arith.constant 0 : index
      %c0_135 = arith.constant 0 : index
      %174 = vector.load %arg6[%c0_132, %c3_133, %c0_134, %c0_135] : memref<1x8x7x16xf32, #tpu.memory_space<vmem>>, vector<1x1x7x16xf32>
      %175 = vector.shape_cast %174 : vector<1x1x7x16xf32> to vector<7x16xf32>
      %176 = vector.shape_cast %173 : vector<1x16xi1> to vector<1x16xi1>
      %177 = vector.broadcast %176 : vector<1x16xi1> to vector<7x16xi1>
      %178 = arith.select %177, %175, %138 : vector<7x16xi1>, vector<7x16xf32>
      %179 = arith.subf %178, %128 : vector<7x16xf32>
      %c0_136 = arith.constant 0 : index
      %c3_137 = arith.constant 3 : index
      %c0_138 = arith.constant 0 : index
      %c0_139 = arith.constant 0 : index
      %180 = vector.load %arg6[%c0_136, %c3_137, %c0_138, %c0_139] : memref<1x8x7x16xf32, #tpu.memory_space<vmem>>, vector<1x1x7x16xf32>
      %181 = vector.shape_cast %180 : vector<1x1x7x16xf32> to vector<7x16xf32>
      %182 = vector.shape_cast %179 : vector<7x16xf32> to vector<1x1x7x16xf32>
      tpu.vector_store %arg6[%c0_136, %c3_137, %c0_138, %c0_139], %182 {strides = array<i32>} : memref<1x8x7x16xf32, #tpu.memory_space<vmem>>, vector<1x1x7x16xf32>,
      %cst_140 = arith.constant 4.000000e+00 : f32
      %183 = vector.broadcast %cst_140 : f32 to vector<1x16xf32>
      %184 = arith.cmpf olt, %183, %125 : vector<1x16xf32>
      %c0_141 = arith.constant 0 : index
      %c4_142 = arith.constant 4 : index
      %c0_143 = arith.constant 0 : index
      %c0_144 = arith.constant 0 : index
      %185 = vector.load %arg6[%c0_141, %c4_142, %c0_143, %c0_144] : memref<1x8x7x16xf32, #tpu.memory_space<vmem>>, vector<1x1x7x16xf32>
      %186 = vector.shape_cast %185 : vector<1x1x7x16xf32> to vector<7x16xf32>
      %187 = vector.shape_cast %184 : vector<1x16xi1> to vector<1x16xi1>
      %188 = vector.broadcast %187 : vector<1x16xi1> to vector<7x16xi1>
      %189 = arith.select %188, %186, %138 : vector<7x16xi1>, vector<7x16xf32>
      %190 = arith.subf %189, %128 : vector<7x16xf32>
      %c0_145 = arith.constant 0 : index
      %c4_146 = arith.constant 4 : index
      %c0_147 = arith.constant 0 : index
      %c0_148 = arith.constant 0 : index
      %191 = vector.load %arg6[%c0_145, %c4_146, %c0_147, %c0_148] : memref<1x8x7x16xf32, #tpu.memory_space<vmem>>, vector<1x1x7x16xf32>
      %192 = vector.shape_cast %191 : vector<1x1x7x16xf32> to vector<7x16xf32>
      %193 = vector.shape_cast %190 : vector<7x16xf32> to vector<1x1x7x16xf32>
      tpu.vector_store %arg6[%c0_145, %c4_146, %c0_147, %c0_148], %193 {strides = array<i32>} : memref<1x8x7x16xf32, #tpu.memory_space<vmem>>, vector<1x1x7x16xf32>,
      %cst_149 = arith.constant 5.000000e+00 : f32
      %194 = vector.broadcast %cst_149 : f32 to vector<1x16xf32>
      %195 = arith.cmpf olt, %194, %125 : vector<1x16xf32>
      %c0_150 = arith.constant 0 : index
      %c5_151 = arith.constant 5 : index
      %c0_152 = arith.constant 0 : index
      %c0_153 = arith.constant 0 : index
      %196 = vector.load %arg6[%c0_150, %c5_151, %c0_152, %c0_153] : memref<1x8x7x16xf32, #tpu.memory_space<vmem>>, vector<1x1x7x16xf32>
      %197 = vector.shape_cast %196 : vector<1x1x7x16xf32> to vector<7x16xf32>
      %198 = vector.shape_cast %195 : vector<1x16xi1> to vector<1x16xi1>
      %199 = vector.broadcast %198 : vector<1x16xi1> to vector<7x16xi1>
      %200 = arith.select %199, %197, %138 : vector<7x16xi1>, vector<7x16xf32>
      %201 = arith.subf %200, %128 : vector<7x16xf32>
      %c0_154 = arith.constant 0 : index
      %c5_155 = arith.constant 5 : index
      %c0_156 = arith.constant 0 : index
      %c0_157 = arith.constant 0 : index
      %202 = vector.load %arg6[%c0_154, %c5_155, %c0_156, %c0_157] : memref<1x8x7x16xf32, #tpu.memory_space<vmem>>, vector<1x1x7x16xf32>
      %203 = vector.shape_cast %202 : vector<1x1x7x16xf32> to vector<7x16xf32>
      %204 = vector.shape_cast %201 : vector<7x16xf32> to vector<1x1x7x16xf32>
      tpu.vector_store %arg6[%c0_154, %c5_155, %c0_156, %c0_157], %204 {strides = array<i32>} : memref<1x8x7x16xf32, #tpu.memory_space<vmem>>, vector<1x1x7x16xf32>,
      %cst_158 = arith.constant 6.000000e+00 : f32
      %205 = vector.broadcast %cst_158 : f32 to vector<1x16xf32>
      %206 = arith.cmpf olt, %205, %125 : vector<1x16xf32>
      %c0_159 = arith.constant 0 : index
      %c6_160 = arith.constant 6 : index
      %c0_161 = arith.constant 0 : index
      %c0_162 = arith.constant 0 : index
      %207 = vector.load %arg6[%c0_159, %c6_160, %c0_161, %c0_162] : memref<1x8x7x16xf32, #tpu.memory_space<vmem>>, vector<1x1x7x16xf32>
      %208 = vector.shape_cast %207 : vector<1x1x7x16xf32> to vector<7x16xf32>
      %209 = vector.shape_cast %206 : vector<1x16xi1> to vector<1x16xi1>
      %210 = vector.broadcast %209 : vector<1x16xi1> to vector<7x16xi1>
      %211 = arith.select %210, %208, %138 : vector<7x16xi1>, vector<7x16xf32>
      %212 = arith.subf %211, %128 : vector<7x16xf32>
      %c0_163 = arith.constant 0 : index
      %c6_164 = arith.constant 6 : index
      %c0_165 = arith.constant 0 : index
      %c0_166 = arith.constant 0 : index
      %213 = vector.load %arg6[%c0_163, %c6_164, %c0_165, %c0_166] : memref<1x8x7x16xf32, #tpu.memory_space<vmem>>, vector<1x1x7x16xf32>
      %214 = vector.shape_cast %213 : vector<1x1x7x16xf32> to vector<7x16xf32>
      %215 = vector.shape_cast %212 : vector<7x16xf32> to vector<1x1x7x16xf32>
      tpu.vector_store %arg6[%c0_163, %c6_164, %c0_165, %c0_166], %215 {strides = array<i32>} : memref<1x8x7x16xf32, #tpu.memory_space<vmem>>, vector<1x1x7x16xf32>,
      %cst_167 = arith.constant 7.000000e+00 : f32
      %216 = vector.broadcast %cst_167 : f32 to vector<1x16xf32>
      %217 = arith.cmpf olt, %216, %125 : vector<1x16xf32>
      %c0_168 = arith.constant 0 : index
      %c7_169 = arith.constant 7 : index
      %c0_170 = arith.constant 0 : index
      %c0_171 = arith.constant 0 : index
      %218 = vector.load %arg6[%c0_168, %c7_169, %c0_170, %c0_171] : memref<1x8x7x16xf32, #tpu.memory_space<vmem>>, vector<1x1x7x16xf32>
      %219 = vector.shape_cast %218 : vector<1x1x7x16xf32> to vector<7x16xf32>
      %220 = vector.shape_cast %217 : vector<1x16xi1> to vector<1x16xi1>
      %221 = vector.broadcast %220 : vector<1x16xi1> to vector<7x16xi1>
      %222 = arith.select %221, %219, %138 : vector<7x16xi1>, vector<7x16xf32>
      %223 = arith.subf %222, %128 : vector<7x16xf32>
      %c0_172 = arith.constant 0 : index
      %c7_173 = arith.constant 7 : index
      %c0_174 = arith.constant 0 : index
      %c0_175 = arith.constant 0 : index
      %224 = vector.load %arg6[%c0_172, %c7_173, %c0_174, %c0_175] : memref<1x8x7x16xf32, #tpu.memory_space<vmem>>, vector<1x1x7x16xf32>
      %225 = vector.shape_cast %224 : vector<1x1x7x16xf32> to vector<7x16xf32>
      %226 = vector.shape_cast %223 : vector<7x16xf32> to vector<1x1x7x16xf32>
      tpu.vector_store %arg6[%c0_172, %c7_173, %c0_174, %c0_175], %226 {strides = array<i32>} : memref<1x8x7x16xf32, #tpu.memory_space<vmem>>, vector<1x1x7x16xf32>,
    } else {
    }
    return
  }
  func.func @transform_0(%arg0: i32, %arg1: i32, %arg2: i32) -> (i32, i32, i32) {
    %c0_i32 = arith.constant 0 : i32
    %c0_i32_0 = arith.constant 0 : i32
    return %arg0, %c0_i32, %arg1 : i32, i32, i32
  }
  func.func @transform_1(%arg0: i32, %arg1: i32, %arg2: i32) -> (i32, i32, i32) {
    %c0_i32 = arith.constant 0 : i32
    %c0_i32_0 = arith.constant 0 : i32
    return %arg0, %arg2, %c0_i32 : i32, i32, i32
  }
  func.func @transform_2(%arg0: i32, %arg1: i32, %arg2: i32) -> (i32, i32, i32) {
    %c0_i32 = arith.constant 0 : i32
    %c0_i32_0 = arith.constant 0 : i32
    return %arg0, %c0_i32, %arg2 : i32, i32, i32
  }
  func.func @transform_3(%arg0: i32, %arg1: i32, %arg2: i32) -> (i32, i32, i32, i32) {
    %c0_i32 = arith.constant 0 : i32
    %c0_i32_0 = arith.constant 0 : i32
    %c0_i32_1 = arith.constant 0 : i32
    return %arg0, %c0_i32, %c0_i32_0, %arg1 : i32, i32, i32, i32
  }
}

</mosaic_0001>

<llo_original>
// kernel: tpu_custom_call.1
$region0: #{tpu_custom_call.1}
  #allocation0 [shape = 'u32[]', space=smem, size = 0x4, offset = 0x4, fixed_abs, tag = 'smem constant byte address 0x4 - core index']
  #allocation1 [shape = 'u32[144,128]{1,0:T(1,128)}', space=vmem, size = 0x12000, scoped, tag = 'internal scratch']
  #allocation2 [shape = 'f32[1,16]{1,0:T(1,128)}', space=vmem, size = 0x200, scoped, tag = 'scratch operand']
  #allocation3 [shape = 'f32[7,1]{1,0:T(8,128)}', space=vmem, size = 0x1000, scoped, tag = 'scratch operand']
  %s0 = inlined_call_operand.vmem [shape: f32[2,8,16], index: 0, kind: input, shape index: {}]
  %s1 = inlined_call_operand.vmem [shape: f32[2,128,8], index: 1, kind: input, shape index: {}]
  %s2 = inlined_call_operand.vmem [shape: f32[2,7,128], index: 2, kind: input, shape index: {}]
  %s3 = inlined_call_operand.vmem [shape: f32[2,8,7,16], index: 3, kind: output, shape index: {}]
  %s4 = sld [smem:[#allocation0]]
  $region53: #{tpu_custom_call.1} parent=0
    _
  %s6 = ssub.s32 1, %s4
  %s7 = scalar_select 0, %s6, %s4
  loop: start=0, step=1, limit=4
  $region2: #{tpu_custom_call.1} parent=0 // loop_pre_header
    _
  $region3: #{tpu_custom_call.1} parent=0 // loop_header
    %s9 = sphi 0, %s13
    %p10 = scmp.ge.s32.totalorder %s9, 4
    %s16 = sphi 0, %s35
    %s17 = sphi 0, %s31
    %s18 = sphi 0, %s27
    %s19 = sphi 0, %s16
    %s20 = sphi 0, %s17
    %s21 = sphi 0, %s18
    %s22 = sphi 0, %s19
    %s23 = sphi 0, %s20
    %s24 = sphi 0, %s21
    %s40 = sphi 0, %s42
    %s43 = sphi 0, %s40
    %s44 = sphi 0, %s43
    %s60 = sphi 0, %s44
    %s68 = sphi 0, %s70
    %s71 = sphi 0, %s68
    %s72 = sphi 0, %s71
    %s88 = sphi 0, %s72
    %s96 = sphi 0, %s98
    %s99 = sphi 0, %s96
    %s100 = sphi 0, %s99
    %s116 = sphi 0, %s100
    %s124 = sphi 0, %s126
    %s127 = sphi 0, %s124
    %s128 = sphi 0, %s127
    %s144 = sphi 0, %s128
  $region4: #{tpu_custom_call.1} parent=0 // loop_header_branch
    %12 = sbr.rel (%p10) target = $region8
  $region5: #{tpu_custom_call.1} parent=0 // loop_body
    %s14 = ssub.s32 %s9, 1
    %s15 = ssub.s32 %s9, 2
    %s25 = sadd.s32 1, %s18
    %p26 = scmp.ge.s32.totalorder %s25, 1
    %s27 = scalar_select %p26, 0, %s25
    %s28 = sadd.s32 1, %s17
    %s29 = scalar_select %p26, %s28, %s17
    %p30 = scmp.ge.s32.totalorder %s29, 1
    %s31 = scalar_select %p30, 0, %s29
    %s32 = sadd.s32 1, %s16
    %s33 = scalar_select %p30, %s32, %s16
    %p34 = scmp.ge.s32.totalorder %s33, 2
    %s35 = scalar_select %p34, 0, %s33
    %s36 = ssub.s32 %s16, %s35
    %s37 = ssub.s32 %s17, %s31
    %s38 = sor.u32 %s36, %s37
    %p39 = scmp.eq.s32.totalorder %s38, 0
    %s41 = sadd.s32 %s40, 1
    %s42 = scalar_select %p39, %s40, %s41
    %p45 = pneg %p39
    %p46 = scmp.eq.s32.totalorder %s9, 1
    %p47 = por %p45, %p46
    %p48 = scmp.ne.s32.totalorder %s40, %s43
    %p49 = scmp.eq.s32.totalorder %s9, 0
    %p50 = por %p48, %p49
    %p51 = scmp.ne.s32.totalorder %s40, %s43
    %p52 = scmp.eq.s32.totalorder %s14, 1
    %p53 = por %p51, %p52
    %p54 = scmp.ne.s32.totalorder %s43, %s44
    %p55 = scmp.eq.s32.totalorder %s14, 0
    %p56 = por %p54, %p55
    %p57 = scmp.ne.s32.totalorder %s43, %s44
    %p58 = scmp.eq.s32.totalorder %s15, 1
    %p59 = por %p57, %p58
    %p61 = scmp.ne.s32.totalorder %s44, %s60
    %p62 = scmp.eq.s32.totalorder %s15, 0
    %p63 = por %p61, %p62
    %s64 = ssub.s32 %s16, %s35
    %s65 = ssub.s32 %s18, %s27
    %s66 = sor.u32 %s64, %s65
    %p67 = scmp.eq.s32.totalorder %s66, 0
    %s69 = sadd.s32 %s68, 1
    %s70 = scalar_select %p67, %s68, %s69
    %p73 = pneg %p67
    %p74 = scmp.eq.s32.totalorder %s9, 1
    %p75 = por %p73, %p74
    %p76 = scmp.ne.s32.totalorder %s68, %s71
    %p77 = scmp.eq.s32.totalorder %s9, 0
    %p78 = por %p76, %p77
    %p79 = scmp.ne.s32.totalorder %s68, %s71
    %p80 = scmp.eq.s32.totalorder %s14, 1
    %p81 = por %p79, %p80
    %p82 = scmp.ne.s32.totalorder %s71, %s72
    %p83 = scmp.eq.s32.totalorder %s14, 0
    %p84 = por %p82, %p83
    %p85 = scmp.ne.s32.totalorder %s71, %s72
    %p86 = scmp.eq.s32.totalorder %s15, 1
    %p87 = por %p85, %p86
    %p89 = scmp.ne.s32.totalorder %s72, %s88
    %p90 = scmp.eq.s32.totalorder %s15, 0
    %p91 = por %p89, %p90
    %s92 = ssub.s32 %s16, %s35
    %s93 = ssub.s32 %s18, %s27
    %s94 = sor.u32 %s92, %s93
    %p95 = scmp.eq.s32.totalorder %s94, 0
    %s97 = sadd.s32 %s96, 1
    %s98 = scalar_select %p95, %s96, %s97
    %p101 = pneg %p95
    %p102 = scmp.eq.s32.totalorder %s9, 1
    %p103 = por %p101, %p102
    %p104 = scmp.ne.s32.totalorder %s96, %s99
    %p105 = scmp.eq.s32.totalorder %s9, 0
    %p106 = por %p104, %p105
    %p107 = scmp.ne.s32.totalorder %s96, %s99
    %p108 = scmp.eq.s32.totalorder %s14, 1
    %p109 = por %p107, %p108
    %p110 = scmp.ne.s32.totalorder %s99, %s100
    %p111 = scmp.eq.s32.totalorder %s14, 0
    %p112 = por %p110, %p111
    %p113 = scmp.ne.s32.totalorder %s99, %s100
    %p114 = scmp.eq.s32.totalorder %s15, 1
    %p115 = por %p113, %p114
    %p117 = scmp.ne.s32.totalorder %s100, %s116
    %p118 = scmp.eq.s32.totalorder %s15, 0
    %p119 = por %p117, %p118
    %s120 = ssub.s32 %s16, %s35
    %s121 = ssub.s32 %s17, %s31
    %s122 = sor.u32 %s120, %s121
    %p123 = scmp.eq.s32.totalorder %s122, 0
    %s125 = sadd.s32 %s124, 1
    %s126 = scalar_select %p123, %s124, %s125
    %p129 = pneg %p123
    %p130 = scmp.eq.s32.totalorder %s9, 1
    %p131 = por %p129, %p130
    %p132 = scmp.ne.s32.totalorder %s124, %s127
    %p133 = scmp.eq.s32.totalorder %s9, 0
    %p134 = por %p132, %p133
    %p135 = scmp.ne.s32.totalorder %s124, %s127
    %p136 = scmp.eq.s32.totalorder %s14, 1
    %p137 = por %p135, %p136
    %p138 = scmp.ne.s32.totalorder %s127, %s128
    %p139 = scmp.eq.s32.totalorder %s14, 0
    %p140 = por %p138, %p139
    %p141 = scmp.ne.s32.totalorder %s127, %s128
    %p142 = scmp.eq.s32.totalorder %s15, 1
    %p143 = por %p141, %p142
    %p145 = scmp.ne.s32.totalorder %s128, %s144
    %p146 = scmp.eq.s32.totalorder %s15, 0
    %p147 = por %p145, %p146
    %p148 = scmp.le.s32.totalorder 1, %s9
    %p149 = scmp.lt.s32.totalorder %s9, 3
    %p150 = pnand %p148, %p149
    %p151 = pneg %p150
    // Predicated region
    $region9: #{tpu_custom_call.1} parent=5 // pred_check
      _
    $region10: #{tpu_custom_call.1} parent=5 // pred_check_branch
      %153 = sbr.rel (%p150) target = $region12
    $region11: #{tpu_custom_call.1} parent=5 // pred_region
      %s154 = ssub.s32 %s9, 1
    $region12: #{tpu_custom_call.1} parent=5 // pred_fallthru
      _
    %p155 = scmp.lt.s32.totalorder %s9, 2
    // Predicated region
    $region13: #{tpu_custom_call.1} parent=5 // pred_check
      %p156 = pneg %p155
    $region14: #{tpu_custom_call.1} parent=5 // pred_check_branch
      %158 = sbr.rel (%p156) target = $region16
    $region15: #{tpu_custom_call.1} parent=5 // pred_region
      // Predicated region
      $region17: #{tpu_custom_call.1} parent=15 // pred_check
        %p159 = pneg %p50
      $region18: #{tpu_custom_call.1} parent=15 // pred_check_branch
        %161 = sbr.rel (%p159) target = $region20
      $region19: #{tpu_custom_call.1} parent=15 // pred_region
        %p162 = scmp.lt.s32.totalorder %s16, 1
        %s163 = scalar_select %p162, %s16, 1
        %p164 = scmp.lt.s32.totalorder %s17, 0
        %s165 = scalar_select %p164, %s17, 0
        %s166 = sadd.s32 %s165, %s163
        %s167 = smul.addr %s166, 8
        %s168 = scalar_lea.vmem %s0, %s167
      $region20: #{tpu_custom_call.1} parent=15 // pred_fallthru
        _
      // Predicated region
      $region21: #{tpu_custom_call.1} parent=15 // pred_check
        %p169 = pneg %p78
      $region22: #{tpu_custom_call.1} parent=15 // pred_check_branch
        %171 = sbr.rel (%p169) target = $region24
      $region23: #{tpu_custom_call.1} parent=15 // pred_region
        %s172 = smul.u32 16, %s18
        %p173 = scmp.lt.s32.totalorder %s16, 1
        %s174 = scalar_select %p173, %s16, 1
        %p175 = scmp.lt.s32.totalorder %s172, 15
        %s176 = scalar_select %p175, %s172, 15
        %s177 = smul.addr %s174, 16
        %s178 = sadd.s32 %s176, %s177
        %s179 = smul.addr %s178, 8
        %s180 = scalar_lea.vmem %s1, %s179
        %s181 = smul.u32 16, %s18
      $region24: #{tpu_custom_call.1} parent=15 // pred_fallthru
        _
      // Predicated region
      $region25: #{tpu_custom_call.1} parent=15 // pred_check
        %p182 = pneg %p106
      $region26: #{tpu_custom_call.1} parent=15 // pred_check_branch
        %184 = sbr.rel (%p182) target = $region28
      $region27: #{tpu_custom_call.1} parent=15 // pred_region
        %p185 = scmp.lt.s32.totalorder %s16, 1
        %s186 = scalar_select %p185, %s16, 1
        %p187 = scmp.lt.s32.totalorder %s18, 0
        %s188 = scalar_select %p187, %s18, 0
        %s189 = sadd.s32 %s188, %s186
        %s190 = smul.addr %s189, 8
        %s191 = scalar_lea.vmem %s2, %s190
      $region28: #{tpu_custom_call.1} parent=15 // pred_fallthru
        _
    $region16: #{tpu_custom_call.1} parent=5 // pred_fallthru
      _
    %p192 = scmp.le.s32.totalorder 1, %s9
    %p193 = scmp.lt.s32.totalorder %s9, 3
    %p194 = pnand %p192, %p193
    %p195 = pneg %p194
    // Predicated region
    $region29: #{tpu_custom_call.1} parent=5 // pred_check
      _
    $region30: #{tpu_custom_call.1} parent=5 // pred_check_branch
      %197 = sbr.rel (%p194) target = $region32
    $region31: #{tpu_custom_call.1} parent=5 // pred_region
      %s198 = ssub.s32 %s9, 1
      %p199 = scmp.lt.s32.totalorder %s19, 1
      %s200 = scalar_select %p199, %s19, 1
      %p201 = scmp.lt.s32.totalorder %s20, 0
      %s202 = scalar_select %p201, %s20, 0
      %s203 = sadd.s32 %s202, %s200
      %s204 = smul.addr %s203, 8
      %s205 = scalar_lea.vmem %s0, %s204
      %p206 = pneg %p56
      %p207 = pneg %p53
      %s208 = smul.u32 16, %s21
      %p209 = scmp.lt.s32.totalorder %s19, 1
      %s210 = scalar_select %p209, %s19, 1
      %p211 = scmp.lt.s32.totalorder %s208, 15
      %s212 = scalar_select %p211, %s208, 15
      %s213 = smul.addr %s210, 16
      %s214 = sadd.s32 %s212, %s213
      %s215 = smul.addr %s214, 8
      %s216 = scalar_lea.vmem %s1, %s215
      %p217 = pneg %p84
      %p218 = pneg %p81
      %p219 = scmp.lt.s32.totalorder %s19, 1
      %s220 = scalar_select %p219, %s19, 1
      %p221 = scmp.lt.s32.totalorder %s21, 0
      %s222 = scalar_select %p221, %s21, 0
      %s223 = sadd.s32 %s222, %s220
      %s224 = smul.addr %s223, 8
      %s225 = scalar_lea.vmem %s2, %s224
      %p226 = pneg %p112
      %p227 = pneg %p109
      %p228 = pneg %p140
      %p229 = pneg %p137
      %p230 = scmp.lt.s32.totalorder %s19, 1
      %s231 = scalar_select %p230, %s19, 1
      %p232 = scmp.lt.s32.totalorder %s20, 0
      %s233 = scalar_select %p232, %s20, 0
      %s234 = smul.addr %s231, 8
      %s235 = sadd.s32 %s233, %s234
      %s236 = smul.addr %s235, 8
      %s237 = scalar_lea.vmem %s3, %s236
      %p238 = scmp.lt.s32.totalorder %s19, 1
      %s239 = scalar_select %p238, %s19, 1
      %p240 = scmp.lt.s32.totalorder %s20, 0
      %s241 = scalar_select %p240, %s20, 0
      %s242 = sadd.s32 %s241, %s239
      %s243 = smul.addr %s242, 8
      %s244 = scalar_lea.vmem %s0, %s243
      %s245 = smul.u32 16, %s21
      %p246 = scmp.lt.s32.totalorder %s19, 1
      %s247 = scalar_select %p246, %s19, 1
      %p248 = scmp.lt.s32.totalorder %s245, 15
      %s249 = scalar_select %p248, %s245, 15
      %s250 = smul.addr %s247, 16
      %s251 = sadd.s32 %s249, %s250
      %s252 = smul.addr %s251, 8
      %s253 = scalar_lea.vmem %s1, %s252
      %s254 = smul.u32 16, %s21
      %p255 = scmp.lt.s32.totalorder %s19, 1
      %s256 = scalar_select %p255, %s19, 1
      %p257 = scmp.lt.s32.totalorder %s21, 0
      %s258 = scalar_select %p257, %s21, 0
      %s259 = sadd.s32 %s258, %s256
      %s260 = smul.addr %s259, 8
      %s261 = scalar_lea.vmem %s2, %s260
      %p262 = scmp.lt.s32.totalorder %s19, 1
      %s263 = scalar_select %p262, %s19, 1
      %p264 = scmp.lt.s32.totalorder %s20, 0
      %s265 = scalar_select %p264, %s20, 0
      %s266 = smul.addr %s263, 8
      %s267 = sadd.s32 %s265, %s266
      %s268 = smul.addr %s267, 8
      %s269 = scalar_lea.vmem %s3, %s268
      %p271 = scmp.eq.s32.totalorder %s21, 0
      // Predicated region
      $region33: #{tpu_custom_call.1} parent=31 // pred_check
        %p272 = pneg %p271
      $region34: #{tpu_custom_call.1} parent=31 // pred_check_branch
        %274 = sbr.rel (%p272) target = $region36
      $region35: #{tpu_custom_call.1} parent=31 // pred_region
        %vm275 = vcmask 122880
        %276 = vst.msk [vmem:[#allocation2] sm:$0x1] %vm275, 0.0
        %vm277 = vcmask 129024
        %278 = vst.msk [vmem:[%s269] sm:$0x7f] %vm277, 0.0
        %279 = vst.msk [vmem:[%s269 + $0x8] sm:$0x7f] %vm277, 0.0
        %280 = vst.msk [vmem:[%s269 + $0x10] sm:$0x7f] %vm277, 0.0
        %281 = vst.msk [vmem:[%s269 + $0x18] sm:$0x7f] %vm277, 0.0
        %282 = vst.msk [vmem:[%s269 + $0x20] sm:$0x7f] %vm277, 0.0
        %283 = vst.msk [vmem:[%s269 + $0x28] sm:$0x7f] %vm277, 0.0
        %284 = vst.msk [vmem:[%s269 + $0x30] sm:$0x7f] %vm277, 0.0
        %285 = vst.msk [vmem:[%s269 + $0x38] sm:$0x7f] %vm277, 0.0
        %v286 = vld [vmem:[%s261] sm:$0x7f]
        %vm287 = vcmask 6144
        %288 = vst.msk [vmem:[#allocation3] sm:$0x7f] %vm287, %v286
      $region36: #{tpu_custom_call.1} parent=31 // pred_fallthru
        _
      %v289 = vld [vmem:[%s244] sm:$0xff]
      %v290 = vld [vmem:[%s253] sm:$0xff]
      %v291 = vld [vmem:[%s253 + $0x8] sm:$0xff]
      %v292 = vld [vmem:[%s253 + $0x10] sm:$0xff]
      %v293 = vld [vmem:[%s253 + $0x18] sm:$0xff]
      %v294 = vld [vmem:[%s253 + $0x20] sm:$0xff]
      %v295 = vld [vmem:[%s253 + $0x28] sm:$0xff]
      %v296 = vld [vmem:[%s253 + $0x30] sm:$0xff]
      %v297 = vld [vmem:[%s253 + $0x38] sm:$0xff]
      %v298 = vld [vmem:[%s253 + $0x40] sm:$0xff]
      %v299 = vld [vmem:[%s253 + $0x48] sm:$0xff]
      %v300 = vld [vmem:[%s253 + $0x50] sm:$0xff]
      %v301 = vld [vmem:[%s253 + $0x58] sm:$0xff]
      %v302 = vld [vmem:[%s253 + $0x60] sm:$0xff]
      %v303 = vld [vmem:[%s253 + $0x68] sm:$0xff]
      %v304 = vld [vmem:[%s253 + $0x70] sm:$0xff]
      %v305 = vld [vmem:[%s253 + $0x78] sm:$0xff]
      %v306 = vld [vmem:[%s261] sm:$0x7f]
      %vm307 = vcmask 64512
      %v309 = vsel %vm307, %v290, 0
      %v312 = vsel %vm307, %v291, 0
      %v315 = vsel %vm307, %v292, 0
      %v318 = vsel %vm307, %v293, 0
      %v321 = vsel %vm307, %v294, 0
      %v324 = vsel %vm307, %v295, 0
      %v327 = vsel %vm307, %v296, 0
      %v330 = vsel %vm307, %v297, 0
      %v333 = vsel %vm307, %v298, 0
      %v336 = vsel %vm307, %v299, 0
      %v339 = vsel %vm307, %v300, 0
      %v342 = vsel %vm307, %v301, 0
      %v345 = vsel %vm307, %v302, 0
      %v348 = vsel %vm307, %v303, 0
      %v351 = vsel %vm307, %v304, 0
      %v354 = vsel %vm307, %v305, 0
      %356 = vmatprep.subr.mxu0 0.0
      %357 = vmatpush1.msra.mxu0 %v289
      %358 = vmatprep.subr.mxu0 0.0
      %359 = vmatpush1.msra.mxu0 0.0
      %360 = vmatprep.subr.mxu0 0.0
      %361 = vmatpush1.msra.mxu0 0.0
      %362 = vmatprep.subr.mxu0 0.0
      %363 = vmatpush1.msra.mxu0 0.0
      %364 = vmatprep.subr.mxu0 0.0
      %365 = vmatpush1.msra.mxu0 0.0
      %366 = vmatprep.subr.mxu0 0.0
      %367 = vmatpush1.msra.mxu0 0.0
      %368 = vmatprep.subr.mxu0 0.0
      %369 = vmatpush1.msra.mxu0 0.0
      %370 = vmatprep.subr.mxu0 0.0
      %371 = vmatpush1.msra.mxu0 0.0
      %372 = vmatprep.subr.mxu0 0.0
      %373 = vmatpush1.msra.mxu0 0.0
      %374 = vmatprep.subr.mxu0 0.0
      %375 = vmatpush1.msra.mxu0 0.0
      %376 = vmatprep.subr.mxu0 0.0
      %377 = vmatpush1.msra.mxu0 0.0
      %378 = vmatprep.subr.mxu0 0.0
      %379 = vmatpush1.msra.mxu0 0.0
      %380 = vmatprep.subr.mxu0 0.0
      %381 = vmatpush1.msra.mxu0 0.0
      %382 = vmatprep.subr.mxu0 0.0
      %383 = vmatpush1.msra.mxu0 0.0
      %384 = vmatprep.subr.mxu0 0.0
      %385 = vmatpush1.msra.mxu0 0.0
      %386 = vmatprep.subr.mxu0 0.0
      %387 = vmatpush1.msra.mxu0 0.0
      %388 = vmatprep.subr.mxu0 0.0
      %389 = vmatpush1.msra.mxu0 0.0
      %390 = vmatprep.subr.mxu0 0.0
      %391 = vmatpush1.msra.mxu0 0.0
      %392 = vmatprep.subr.mxu0 0.0
      %393 = vmatpush1.msra.mxu0 0.0
      %394 = vmatprep.subr.mxu0 0.0
      %395 = vmatpush1.msra.mxu0 0.0
      %396 = vmatprep.subr.mxu0 0.0
      %397 = vmatpush1.msra.mxu0 0.0
      %398 = vmatprep.subr.mxu0 0.0
      %399 = vmatpush1.msra.mxu0 0.0
      %400 = vmatprep.subr.mxu0 0.0
      %401 = vmatpush1.msra.mxu0 0.0
      %402 = vmatprep.subr.mxu0 0.0
      %403 = vmatpush1.msra.mxu0 0.0
      %404 = vmatprep.subr.mxu0 0.0
      %405 = vmatpush1.msra.mxu0 0.0
      %406 = vmatprep.subr.mxu0 0.0
      %407 = vmatpush1.msra.mxu0 0.0
      %408 = vmatprep.subr.mxu0 0.0
      %409 = vmatpush1.msra.mxu0 0.0
      %410 = vmatprep.subr.mxu0 0.0
      %411 = vmatpush1.msra.mxu0 0.0
      %412 = vmatprep.subr.mxu0 0.0
      %413 = vmatpush1.msra.mxu0 0.0
      %414 = vmatprep.subr.mxu0 0.0
      %415 = vmatpush1.msra.mxu0 0.0
      %416 = vmatprep.subr.mxu0 0.0
      %417 = vmatpush1.msra.mxu0 0.0
      %418 = vmatprep.subr.mxu0 0.0
      %419 = vmatpush1.msra.mxu0 0.0
      %420 = vmatprep.mubr.f32.mxu0 0.0
      %421 = vmatmul.mubr.f32.gmra.mrb[0].mxu0 %v309
      %v422 = vpop.f32.mrb[0].mxu0
      %v423 = vadd.f32 0.0, %v422
      %v424 = vpop.f32.mrb[0].mxu0
      %425 = vmatprep.mubr.f32.mxu0 0.0
      %426 = vmatmul.mubr.f32.gmra.mrb[0].mxu0 %v312
      %v427 = vpop.f32.mrb[0].mxu0
      %v428 = vadd.f32 0.0, %v427
      %v429 = vpop.f32.mrb[0].mxu0
      %430 = vmatprep.mubr.f32.mxu0 0.0
      %431 = vmatmul.mubr.f32.gmra.mrb[0].mxu0 %v315
      %v432 = vpop.f32.mrb[0].mxu0
      %v433 = vadd.f32 0.0, %v432
      %v434 = vpop.f32.mrb[0].mxu0
      %435 = vmatprep.mubr.f32.mxu0 0.0
      %436 = vmatmul.mubr.f32.gmra.mrb[0].mxu0 %v318
      %v437 = vpop.f32.mrb[0].mxu0
      %v438 = vadd.f32 0.0, %v437
      %v439 = vpop.f32.mrb[0].mxu0
      %440 = vmatprep.mubr.f32.mxu0 0.0
      %441 = vmatmul.mubr.f32.gmra.mrb[0].mxu0 %v321
      %v442 = vpop.f32.mrb[0].mxu0
      %v443 = vadd.f32 0.0, %v442
      %v444 = vpop.f32.mrb[0].mxu0
      %445 = vmatprep.mubr.f32.mxu0 0.0
      %446 = vmatmul.mubr.f32.gmra.mrb[0].mxu0 %v324
      %v447 = vpop.f32.mrb[0].mxu0
      %v448 = vadd.f32 0.0, %v447
      %v449 = vpop.f32.mrb[0].mxu0
      %450 = vmatprep.mubr.f32.mxu0 0.0
      %451 = vmatmul.mubr.f32.gmra.mrb[0].mxu0 %v327
      %v452 = vpop.f32.mrb[0].mxu0
      %v453 = vadd.f32 0.0, %v452
      %v454 = vpop.f32.mrb[0].mxu0
      %455 = vmatprep.mubr.f32.mxu0 0.0
      %456 = vmatmul.mubr.f32.gmra.mrb[0].mxu0 %v330
      %v457 = vpop.f32.mrb[0].mxu0
      %v458 = vadd.f32 0.0, %v457
      %v459 = vpop.f32.mrb[0].mxu0
      %460 = vmatprep.mubr.f32.mxu0 0.0
      %461 = vmatmul.mubr.f32.gmra.mrb[0].mxu0 %v333
      %v462 = vpop.f32.mrb[0].mxu0
      %v463 = vadd.f32 0.0, %v462
      %v464 = vpop.f32.mrb[0].mxu0
      %465 = vmatprep.mubr.f32.mxu0 0.0
      %466 = vmatmul.mubr.f32.gmra.mrb[0].mxu0 %v336
      %v467 = vpop.f32.mrb[0].mxu0
      %v468 = vadd.f32 0.0, %v467
      %v469 = vpop.f32.mrb[0].mxu0
      %470 = vmatprep.mubr.f32.mxu0 0.0
      %471 = vmatmul.mubr.f32.gmra.mrb[0].mxu0 %v339
      %v472 = vpop.f32.mrb[0].mxu0
      %v473 = vadd.f32 0.0, %v472
      %v474 = vpop.f32.mrb[0].mxu0
      %475 = vmatprep.mubr.f32.mxu0 0.0
      %476 = vmatmul.mubr.f32.gmra.mrb[0].mxu0 %v342
      %v477 = vpop.f32.mrb[0].mxu0
      %v478 = vadd.f32 0.0, %v477
      %v479 = vpop.f32.mrb[0].mxu0
      %480 = vmatprep.mubr.f32.mxu0 0.0
      %481 = vmatmul.mubr.f32.gmra.mrb[0].mxu0 %v345
      %v482 = vpop.f32.mrb[0].mxu0
      %v483 = vadd.f32 0.0, %v482
      %v484 = vpop.f32.mrb[0].mxu0
      %485 = vmatprep.mubr.f32.mxu0 0.0
      %486 = vmatmul.mubr.f32.gmra.mrb[0].mxu0 %v348
      %v487 = vpop.f32.mrb[0].mxu0
      %v488 = vadd.f32 0.0, %v487
      %v489 = vpop.f32.mrb[0].mxu0
      %490 = vmatprep.mubr.f32.mxu0 0.0
      %491 = vmatmul.mubr.f32.gmra.mrb[0].mxu0 %v351
      %v492 = vpop.f32.mrb[0].mxu0
      %v493 = vadd.f32 0.0, %v492
      %v494 = vpop.f32.mrb[0].mxu0
      %495 = vmatprep.mubr.f32.mxu0 0.0
      %496 = vmatmul.mubr.f32.gmra.mrb[0].mxu0 %v354
      %v497 = vpop.f32.mrb[0].mxu0
      %v498 = vadd.f32 0.0, %v497
      %v499 = vpop.f32.mrb[0].mxu0
      %500 = vdwg.mxu0
      %vm501 = vcmp.lt.f32.partialorder %v423, 0.0
      %vm502 = vcmp.lt.f32.partialorder %v428, 0.0
      %vm503 = vcmp.lt.f32.partialorder %v433, 0.0
      %vm504 = vcmp.lt.f32.partialorder %v438, 0.0
      %vm505 = vcmp.lt.f32.partialorder %v443, 0.0
      %vm506 = vcmp.lt.f32.partialorder %v448, 0.0
      %vm507 = vcmp.lt.f32.partialorder %v453, 0.0
      %vm508 = vcmp.lt.f32.partialorder %v458, 0.0
      %vm509 = vcmp.lt.f32.partialorder %v463, 0.0
      %vm510 = vcmp.lt.f32.partialorder %v468, 0.0
      %vm511 = vcmp.lt.f32.partialorder %v473, 0.0
      %vm512 = vcmp.lt.f32.partialorder %v478, 0.0
      %vm513 = vcmp.lt.f32.partialorder %v483, 0.0
      %vm514 = vcmp.lt.f32.partialorder %v488, 0.0
      %vm515 = vcmp.lt.f32.partialorder %v493, 0.0
      %vm516 = vcmp.lt.f32.partialorder %v498, 0.0
      %v517 = vlaneseq
      %v518 = vshrl.u32 %v517, 7
      %v519 = vadd.s32 %v518, 8
      %v520 = vadd.s32 %v518, 16
      %v521 = vadd.s32 %v518, 24
      %v522 = vadd.s32 %v518, 32
      %v523 = vadd.s32 %v518, 40
      %v524 = vadd.s32 %v518, 48
      %v525 = vadd.s32 %v518, 56
      %v526 = vadd.s32 %v518, 64
      %v527 = vadd.s32 %v518, 72
      %v528 = vadd.s32 %v518, 80
      %v529 = vadd.s32 %v518, 88
      %v530 = vadd.s32 %v518, 96
      %v531 = vadd.s32 %v518, 104
      %v532 = vadd.s32 %v518, 112
      %v533 = vadd.s32 %v518, 120
      %v534 = vlaneseq
      %v535 = vand.u32 %v534, 127
      %vm536 = vcmp.lt.s32.totalorder %v535, %v518
      %vm537 = vcmp.lt.s32.totalorder %v535, %v519
      %vm538 = vcmp.lt.s32.totalorder %v535, %v520
      %vm539 = vcmp.lt.s32.totalorder %v535, %v521
      %vm540 = vcmp.lt.s32.totalorder %v535, %v522
      %vm541 = vcmp.lt.s32.totalorder %v535, %v523
      %vm542 = vcmp.lt.s32.totalorder %v535, %v524
      %vm543 = vcmp.lt.s32.totalorder %v535, %v525
      %vm544 = vcmp.lt.s32.totalorder %v535, %v526
      %vm545 = vcmp.lt.s32.totalorder %v535, %v527
      %vm546 = vcmp.lt.s32.totalorder %v535, %v528
      %vm547 = vcmp.lt.s32.totalorder %v535, %v529
      %vm548 = vcmp.lt.s32.totalorder %v535, %v530
      %vm549 = vcmp.lt.s32.totalorder %v535, %v531
      %vm550 = vcmp.lt.s32.totalorder %v535, %v532
      %vm551 = vcmp.lt.s32.totalorder %v535, %v533
      %v552 = vsel %vm536, 1, 0
      %v553 = vsel %vm537, 1, 0
      %v554 = vsel %vm538, 1, 0
      %v555 = vsel %vm539, 1, 0
      %v556 = vsel %vm540, 1, 0
      %v557 = vsel %vm541, 1, 0
      %v558 = vsel %vm542, 1, 0
      %v559 = vsel %vm543, 1, 0
      %v560 = vsel %vm544, 1, 0
      %v561 = vsel %vm545, 1, 0
      %v562 = vsel %vm546, 1, 0
      %v563 = vsel %vm547, 1, 0
      %v564 = vsel %vm548, 1, 0
      %v565 = vsel %vm549, 1, 0
      %v566 = vsel %vm550, 1, 0
      %v567 = vsel %vm551, 1, 0
      %v568 = vcvt.s32.f32 %v552
      %v569 = vcvt.s32.f32 %v553
      %v570 = vcvt.s32.f32 %v554
      %v571 = vcvt.s32.f32 %v555
      %v572 = vcvt.s32.f32 %v556
      %v573 = vcvt.s32.f32 %v557
      %v574 = vcvt.s32.f32 %v558
      %v575 = vcvt.s32.f32 %v559
      %v576 = vcvt.s32.f32 %v560
      %v577 = vcvt.s32.f32 %v561
      %v578 = vcvt.s32.f32 %v562
      %v579 = vcvt.s32.f32 %v563
      %v580 = vcvt.s32.f32 %v564
      %v581 = vcvt.s32.f32 %v565
      %v582 = vcvt.s32.f32 %v566
      %v583 = vcvt.s32.f32 %v567
      %v584 = vpack.c.bf16 %v569, %v568
      %v585 = vpack.c.bf16 %v571, %v570
      %v586 = vpack.c.bf16 %v573, %v572
      %v587 = vpack.c.bf16 %v575, %v574
      %v588 = vpack.c.bf16 %v577, %v576
      %v589 = vpack.c.bf16 %v579, %v578
      %v590 = vpack.c.bf16 %v581, %v580
      %v591 = vpack.c.bf16 %v583, %v582
      %v592 = vsel %vm501, 1, 0
      %v593 = vsel %vm502, 1, 0
      %v594 = vsel %vm503, 1, 0
      %v595 = vsel %vm504, 1, 0
      %v596 = vsel %vm505, 1, 0
      %v597 = vsel %vm506, 1, 0
      %v598 = vsel %vm507, 1, 0
      %v599 = vsel %vm508, 1, 0
      %v600 = vsel %vm509, 1, 0
      %v601 = vsel %vm510, 1, 0
      %v602 = vsel %vm511, 1, 0
      %v603 = vsel %vm512, 1, 0
      %v604 = vsel %vm513, 1, 0
      %v605 = vsel %vm514, 1, 0
      %v606 = vsel %vm515, 1, 0
      %v607 = vsel %vm516, 1, 0
      %v608 = vcvt.s32.f32 %v592
      %v609 = vcvt.s32.f32 %v593
      %v610 = vcvt.s32.f32 %v594
      %v611 = vcvt.s32.f32 %v595
      %v612 = vcvt.s32.f32 %v596
      %v613 = vcvt.s32.f32 %v597
      %v614 = vcvt.s32.f32 %v598
      %v615 = vcvt.s32.f32 %v599
      %v616 = vcvt.s32.f32 %v600
      %v617 = vcvt.s32.f32 %v601
      %v618 = vcvt.s32.f32 %v602
      %v619 = vcvt.s32.f32 %v603
      %v620 = vcvt.s32.f32 %v604
      %v621 = vcvt.s32.f32 %v605
      %v622 = vcvt.s32.f32 %v606
      %v623 = vcvt.s32.f32 %v607
      %v624 = vpack.c.bf16 %v609, %v608
      %v625 = vpack.c.bf16 %v611, %v610
      %v626 = vpack.c.bf16 %v613, %v612
      %v627 = vpack.c.bf16 %v615, %v614
      %v628 = vpack.c.bf16 %v617, %v616
      %v629 = vpack.c.bf16 %v619, %v618
      %v630 = vpack.c.bf16 %v621, %v620
      %v631 = vpack.c.bf16 %v623, %v622
      %v632 = vld [vmem:[#allocation2] sm:$0x1]
      %v634 = vlaneseq
      %v635 = vshrl.u32 %v634, 7
      %v636 = vsub.s32 0, %v635
      %v637 = vrot.slane %v632, %v636
      %639 = vmatprep.subr.bf16.mxu0 0
      %640 = vmatpush1.bf16.msra.mxu0 %v624
      %641 = vmatprep.subr.bf16.mxu0 0
      %642 = vmatpush1.bf16.msra.mxu0 %v625
      %643 = vmatprep.subr.bf16.mxu0 0
      %644 = vmatpush1.bf16.msra.mxu0 %v626
      %645 = vmatprep.subr.bf16.mxu0 0
      %646 = vmatpush1.bf16.msra.mxu0 %v627
      %647 = vmatprep.subr.bf16.mxu0 0
      %648 = vmatpush1.bf16.msra.mxu0 %v628
      %649 = vmatprep.subr.bf16.mxu0 0
      %650 = vmatpush1.bf16.msra.mxu0 %v629
      %651 = vmatprep.subr.bf16.mxu0 0
      %652 = vmatpush1.bf16.msra.mxu0 %v630
      %653 = vmatprep.subr.bf16.mxu0 0
      %654 = vmatpush1.bf16.msra.mxu0 %v631
      %655 = vmatprep.subr.bf16.mxu0 0
      %656 = vmatpush1.bf16.msra.mxu0 0
      %657 = vmatprep.subr.bf16.mxu0 0
      %658 = vmatpush1.bf16.msra.mxu0 0
      %659 = vmatprep.subr.bf16.mxu0 0
      %660 = vmatpush1.bf16.msra.mxu0 0
      %661 = vmatprep.subr.bf16.mxu0 0
      %662 = vmatpush1.bf16.msra.mxu0 0
      %663 = vmatprep.subr.bf16.mxu0 0
      %664 = vmatpush1.bf16.msra.mxu0 0
      %665 = vmatprep.subr.bf16.mxu0 0
      %666 = vmatpush1.bf16.msra.mxu0 0
      %667 = vmatprep.subr.bf16.mxu0 0
      %668 = vmatpush1.bf16.msra.mxu0 0
      %669 = vmatprep.subr.bf16.mxu0 0
      %670 = vmatpush1.bf16.msra.mxu0 0
      %671 = vmatprep.mubr.bf16.mxu0 0
      %672 = vmatmul.mubr.bf16.gmra.mrb[0].mxu0 %v584
      %v673 = vpop.f32.mrb[0].mxu0
      %v674 = vadd.f32 %v637, %v673
      %v675 = vpop.f32.mrb[0].mxu0
      %v676 = vpop.f32.mrb[0].mxu0
      %v677 = vadd.f32 %v637, %v676
      %v678 = vpop.f32.mrb[0].mxu0
      %679 = vmatprep.mubr.bf16.mxu0 0
      %680 = vmatmul.mubr.bf16.gmra.mrb[0].mxu0 %v585
      %v681 = vpop.f32.mrb[0].mxu0
      %v682 = vadd.f32 %v637, %v681
      %v683 = vpop.f32.mrb[0].mxu0
      %v684 = vpop.f32.mrb[0].mxu0
      %v685 = vadd.f32 %v637, %v684
      %v686 = vpop.f32.mrb[0].mxu0
      %687 = vmatprep.mubr.bf16.mxu0 0
      %688 = vmatmul.mubr.bf16.gmra.mrb[0].mxu0 %v586
      %v689 = vpop.f32.mrb[0].mxu0
      %v690 = vadd.f32 %v637, %v689
      %v691 = vpop.f32.mrb[0].mxu0
      %v692 = vpop.f32.mrb[0].mxu0
      %v693 = vadd.f32 %v637, %v692
      %v694 = vpop.f32.mrb[0].mxu0
      %695 = vmatprep.mubr.bf16.mxu0 0
      %696 = vmatmul.mubr.bf16.gmra.mrb[0].mxu0 %v587
      %v697 = vpop.f32.mrb[0].mxu0
      %v698 = vadd.f32 %v637, %v697
      %v699 = vpop.f32.mrb[0].mxu0
      %v700 = vpop.f32.mrb[0].mxu0
      %v701 = vadd.f32 %v637, %v700
      %v702 = vpop.f32.mrb[0].mxu0
      %703 = vmatprep.mubr.bf16.mxu0 0
      %704 = vmatmul.mubr.bf16.gmra.mrb[0].mxu0 %v588
      %v705 = vpop.f32.mrb[0].mxu0
      %v706 = vadd.f32 %v637, %v705
      %v707 = vpop.f32.mrb[0].mxu0
      %v708 = vpop.f32.mrb[0].mxu0
      %v709 = vadd.f32 %v637, %v708
      %v710 = vpop.f32.mrb[0].mxu0
      %711 = vmatprep.mubr.bf16.mxu0 0
      %712 = vmatmul.mubr.bf16.gmra.mrb[0].mxu0 %v589
      %v713 = vpop.f32.mrb[0].mxu0
      %v714 = vadd.f32 %v637, %v713
      %v715 = vpop.f32.mrb[0].mxu0
      %v716 = vpop.f32.mrb[0].mxu0
      %v717 = vadd.f32 %v637, %v716
      %v718 = vpop.f32.mrb[0].mxu0
      %719 = vmatprep.mubr.bf16.mxu0 0
      %720 = vmatmul.mubr.bf16.gmra.mrb[0].mxu0 %v590
      %v721 = vpop.f32.mrb[0].mxu0
      %v722 = vadd.f32 %v637, %v721
      %v723 = vpop.f32.mrb[0].mxu0
      %v724 = vpop.f32.mrb[0].mxu0
      %v725 = vadd.f32 %v637, %v724
      %v726 = vpop.f32.mrb[0].mxu0
      %727 = vmatprep.mubr.bf16.mxu0 0
      %728 = vmatmul.mubr.bf16.gmra.mrb[0].mxu0 %v591
      %v729 = vpop.f32.mrb[0].mxu0
      %v730 = vadd.f32 %v637, %v729
      %v731 = vpop.f32.mrb[0].mxu0
      %v732 = vpop.f32.mrb[0].mxu0
      %v733 = vadd.f32 %v637, %v732
      %v734 = vpop.f32.mrb[0].mxu0
      %735 = vdwg.mxu0
      %vm736 = vcmask 130048
      %v737 = vsel %vm736, %v608, 0.0
      %v738 = vsel %vm736, %v609, 0.0
      %v739 = vadd.f32 %v737, %v738
      %v740 = vsel %vm736, %v610, 0.0
      %v741 = vadd.f32 %v739, %v740
      %v742 = vsel %vm736, %v611, 0.0
      %v743 = vadd.f32 %v741, %v742
      %v744 = vsel %vm736, %v612, 0.0
      %v745 = vadd.f32 %v743, %v744
      %v746 = vsel %vm736, %v613, 0.0
      %v747 = vadd.f32 %v745, %v746
      %v748 = vsel %vm736, %v614, 0.0
      %v749 = vadd.f32 %v747, %v748
      %v750 = vsel %vm736, %v615, 0.0
      %v751 = vadd.f32 %v749, %v750
      %v752 = vsel %vm736, %v616, 0.0
      %v753 = vadd.f32 %v751, %v752
      %v754 = vsel %vm736, %v617, 0.0
      %v755 = vadd.f32 %v753, %v754
      %v756 = vsel %vm736, %v618, 0.0
      %v757 = vadd.f32 %v755, %v756
      %v758 = vsel %vm736, %v619, 0.0
      %v759 = vadd.f32 %v757, %v758
      %v760 = vsel %vm736, %v620, 0.0
      %v761 = vadd.f32 %v759, %v760
      %v762 = vsel %vm736, %v621, 0.0
      %v763 = vadd.f32 %v761, %v762
      %v764 = vsel %vm736, %v622, 0.0
      %v765 = vadd.f32 %v763, %v764
      %v766 = vsel %vm736, %v623, 0.0
      %v767 = vadd.f32 %v765, %v766
      %v768 = vrot.slane %v767, 4
      %v769 = vadd.f32 %v767, %v768
      %v770 = vrot.slane %v769, 2
      %v771 = vadd.f32 %v769, %v770
      %v772 = vrot.slane %v771, 1
      %v773 = vadd.f32 %v771, %v772
      %v774 = vadd.f32 %v632, %v773
      %vm775 = vcmask 122880
      %776 = vst.msk [vmem:[#allocation2] sm:$0x1] %vm775, %v774
      %v777 = vsel %vm501, %v674, -1.0
      %v778 = vsel %vm502, %v677, -1.0
      %v779 = vsel %vm503, %v682, -1.0
      %v780 = vsel %vm504, %v685, -1.0
      %v781 = vsel %vm505, %v690, -1.0
      %v782 = vsel %vm506, %v693, -1.0
      %v783 = vsel %vm507, %v698, -1.0
      %v784 = vsel %vm508, %v701, -1.0
      %v785 = vsel %vm509, %v706, -1.0
      %v786 = vsel %vm510, %v709, -1.0
      %v787 = vsel %vm511, %v714, -1.0
      %v788 = vsel %vm512, %v717, -1.0
      %v789 = vsel %vm513, %v722, -1.0
      %v790 = vsel %vm514, %v725, -1.0
      %v791 = vsel %vm515, %v730, -1.0
      %v792 = vsel %vm516, %v733, -1.0
      %vm793 = vcmp.eq.f32.partialorder %v777, 0.0
      %vm794 = vcmp.eq.f32.partialorder %v778, 0.0
      %vm795 = vcmp.eq.f32.partialorder %v779, 0.0
      %vm796 = vcmp.eq.f32.partialorder %v780, 0.0
      %vm797 = vcmp.eq.f32.partialorder %v781, 0.0
      %vm798 = vcmp.eq.f32.partialorder %v782, 0.0
      %vm799 = vcmp.eq.f32.partialorder %v783, 0.0
      %vm800 = vcmp.eq.f32.partialorder %v784, 0.0
      %vm801 = vcmp.eq.f32.partialorder %v785, 0.0
      %vm802 = vcmp.eq.f32.partialorder %v786, 0.0
      %vm803 = vcmp.eq.f32.partialorder %v787, 0.0
      %vm804 = vcmp.eq.f32.partialorder %v788, 0.0
      %vm805 = vcmp.eq.f32.partialorder %v789, 0.0
      %vm806 = vcmp.eq.f32.partialorder %v790, 0.0
      %vm807 = vcmp.eq.f32.partialorder %v791, 0.0
      %vm808 = vcmp.eq.f32.partialorder %v792, 0.0
      %v809 = vsel %vm793, 1, 0
      %v810 = vsel %vm794, 1, 0
      %v811 = vsel %vm795, 1, 0
      %v812 = vsel %vm796, 1, 0
      %v813 = vsel %vm797, 1, 0
      %v814 = vsel %vm798, 1, 0
      %v815 = vsel %vm799, 1, 0
      %v816 = vsel %vm800, 1, 0
      %v817 = vsel %vm801, 1, 0
      %v818 = vsel %vm802, 1, 0
      %v819 = vsel %vm803, 1, 0
      %v820 = vsel %vm804, 1, 0
      %v821 = vsel %vm805, 1, 0
      %v822 = vsel %vm806, 1, 0
      %v823 = vsel %vm807, 1, 0
      %v824 = vsel %vm808, 1, 0
      %v825 = vcvt.s32.f32 %v809
      %v826 = vcvt.s32.f32 %v810
      %v827 = vcvt.s32.f32 %v811
      %v828 = vcvt.s32.f32 %v812
      %v829 = vcvt.s32.f32 %v813
      %v830 = vcvt.s32.f32 %v814
      %v831 = vcvt.s32.f32 %v815
      %v832 = vcvt.s32.f32 %v816
      %v833 = vcvt.s32.f32 %v817
      %v834 = vcvt.s32.f32 %v818
      %v835 = vcvt.s32.f32 %v819
      %v836 = vcvt.s32.f32 %v820
      %v837 = vcvt.s32.f32 %v821
      %v838 = vcvt.s32.f32 %v822
      %v839 = vcvt.s32.f32 %v823
      %v840 = vcvt.s32.f32 %v824
      %v841 = vld [vmem:[%s269] sm:$0x7f]
      %842 = vmatprep.subr.mxu0 0.0
      %843 = vmatpush1.msra.mxu0 %v825
      %844 = vmatprep.subr.mxu0 0.0
      %845 = vmatpush1.msra.mxu0 %v826
      %846 = vmatprep.subr.mxu0 0.0
      %847 = vmatpush1.msra.mxu0 %v827
      %848 = vmatprep.subr.mxu0 0.0
      %849 = vmatpush1.msra.mxu0 %v828
      %850 = vmatprep.subr.mxu0 0.0
      %851 = vmatpush1.msra.mxu0 %v829
      %852 = vmatprep.subr.mxu0 0.0
      %853 = vmatpush1.msra.mxu0 %v830
      %854 = vmatprep.subr.mxu0 0.0
      %855 = vmatpush1.msra.mxu0 %v831
      %856 = vmatprep.subr.mxu0 0.0
      %857 = vmatpush1.msra.mxu0 %v832
      %858 = vmatprep.subr.mxu0 0.0
      %859 = vmatpush1.msra.mxu0 %v833
      %860 = vmatprep.subr.mxu0 0.0
      %861 = vmatpush1.msra.mxu0 %v834
      %862 = vmatprep.subr.mxu0 0.0
      %863 = vmatpush1.msra.mxu0 %v835
      %864 = vmatprep.subr.mxu0 0.0
      %865 = vmatpush1.msra.mxu0 %v836
      %866 = vmatprep.subr.mxu0 0.0
      %867 = vmatpush1.msra.mxu0 %v837
      %868 = vmatprep.subr.mxu0 0.0
      %869 = vmatpush1.msra.mxu0 %v838
      %870 = vmatprep.subr.mxu0 0.0
      %871 = vmatpush1.msra.mxu0 %v839
      %872 = vmatprep.subr.mxu0 0.0
      %873 = vmatpush1.msra.mxu0 %v840
      %874 = vmatprep.subr.mxu0 0.0
      %875 = vmatpush1.msra.mxu0 0.0
      %876 = vmatprep.subr.mxu0 0.0
      %877 = vmatpush1.msra.mxu0 0.0
      %878 = vmatprep.subr.mxu0 0.0
      %879 = vmatpush1.msra.mxu0 0.0
      %880 = vmatprep.subr.mxu0 0.0
      %881 = vmatpush1.msra.mxu0 0.0
      %882 = vmatprep.subr.mxu0 0.0
      %883 = vmatpush1.msra.mxu0 0.0
      %884 = vmatprep.subr.mxu0 0.0
      %885 = vmatpush1.msra.mxu0 0.0
      %886 = vmatprep.subr.mxu0 0.0
      %887 = vmatpush1.msra.mxu0 0.0
      %888 = vmatprep.subr.mxu0 0.0
      %889 = vmatpush1.msra.mxu0 0.0
      %890 = vmatprep.subr.mxu0 0.0
      %891 = vmatpush1.msra.mxu0 0.0
      %892 = vmatprep.subr.mxu0 0.0
      %893 = vmatpush1.msra.mxu0 0.0
      %894 = vmatprep.subr.mxu0 0.0
      %895 = vmatpush1.msra.mxu0 0.0
      %896 = vmatprep.subr.mxu0 0.0
      %897 = vmatpush1.msra.mxu0 0.0
      %898 = vmatprep.subr.mxu0 0.0
      %899 = vmatpush1.msra.mxu0 0.0
      %900 = vmatprep.subr.mxu0 0.0
      %901 = vmatpush1.msra.mxu0 0.0
      %902 = vmatprep.subr.mxu0 0.0
      %903 = vmatpush1.msra.mxu0 0.0
      %904 = vmatprep.subr.mxu0 0.0
      %905 = vmatpush1.msra.mxu0 0.0
      %906 = vmatprep.mubr.f32.mxu0 0.0
      %907 = vmatmul.mubr.f32.gmra.mrb[0].mxu0 %v306
      %v908 = vpop.f32.mrb[0].mxu0
      %v909 = vadd.f32 0.0, %v908
      %v910 = vpop.f32.mrb[0].mxu0
      %911 = vdwg.mxu0
      %v912 = vadd.f32 %v841, %v909
      %vm913 = vcmask 129024
      %914 = vst.msk [vmem:[%s269] sm:$0x7f] %vm913, %v912
      %vm915 = vcmp.eq.f32.partialorder %v777, 1.0
      %vm916 = vcmp.eq.f32.partialorder %v778, 1.0
      %vm917 = vcmp.eq.f32.partialorder %v779, 1.0
      %vm918 = vcmp.eq.f32.partialorder %v780, 1.0
      %vm919 = vcmp.eq.f32.partialorder %v781, 1.0
      %vm920 = vcmp.eq.f32.partialorder %v782, 1.0
      %vm921 = vcmp.eq.f32.partialorder %v783, 1.0
      %vm922 = vcmp.eq.f32.partialorder %v784, 1.0
      %vm923 = vcmp.eq.f32.partialorder %v785, 1.0
      %vm924 = vcmp.eq.f32.partialorder %v786, 1.0
      %vm925 = vcmp.eq.f32.partialorder %v787, 1.0
      %vm926 = vcmp.eq.f32.partialorder %v788, 1.0
      %vm927 = vcmp.eq.f32.partialorder %v789, 1.0
      %vm928 = vcmp.eq.f32.partialorder %v790, 1.0
      %vm929 = vcmp.eq.f32.partialorder %v791, 1.0
      %vm930 = vcmp.eq.f32.partialorder %v792, 1.0
      %v931 = vsel %vm915, 1, 0
      %v932 = vsel %vm916, 1, 0
      %v933 = vsel %vm917, 1, 0
      %v934 = vsel %vm918, 1, 0
      %v935 = vsel %vm919, 1, 0
      %v936 = vsel %vm920, 1, 0
      %v937 = vsel %vm921, 1, 0
      %v938 = vsel %vm922, 1, 0
      %v939 = vsel %vm923, 1, 0
      %v940 = vsel %vm924, 1, 0
      %v941 = vsel %vm925, 1, 0
      %v942 = vsel %vm926, 1, 0
      %v943 = vsel %vm927, 1, 0
      %v944 = vsel %vm928, 1, 0
      %v945 = vsel %vm929, 1, 0
      %v946 = vsel %vm930, 1, 0
      %v947 = vcvt.s32.f32 %v931
      %v948 = vcvt.s32.f32 %v932
      %v949 = vcvt.s32.f32 %v933
      %v950 = vcvt.s32.f32 %v934
      %v951 = vcvt.s32.f32 %v935
      %v952 = vcvt.s32.f32 %v936
      %v953 = vcvt.s32.f32 %v937
      %v954 = vcvt.s32.f32 %v938
      %v955 = vcvt.s32.f32 %v939
      %v956 = vcvt.s32.f32 %v940
      %v957 = vcvt.s32.f32 %v941
      %v958 = vcvt.s32.f32 %v942
      %v959 = vcvt.s32.f32 %v943
      %v960 = vcvt.s32.f32 %v944
      %v961 = vcvt.s32.f32 %v945
      %v962 = vcvt.s32.f32 %v946
      %s963 = scalar_lea.vmem %s269, 8
      %v964 = vld [vmem:[%s963] sm:$0x7f]
      %965 = vmatprep.subr.mxu0 0.0
      %966 = vmatpush1.msra.mxu0 %v947
      %967 = vmatprep.subr.mxu0 0.0
      %968 = vmatpush1.msra.mxu0 %v948
      %969 = vmatprep.subr.mxu0 0.0
      %970 = vmatpush1.msra.mxu0 %v949
      %971 = vmatprep.subr.mxu0 0.0
      %972 = vmatpush1.msra.mxu0 %v950
      %973 = vmatprep.subr.mxu0 0.0
      %974 = vmatpush1.msra.mxu0 %v951
      %975 = vmatprep.subr.mxu0 0.0
      %976 = vmatpush1.msra.mxu0 %v952
      %977 = vmatprep.subr.mxu0 0.0
      %978 = vmatpush1.msra.mxu0 %v953
      %979 = vmatprep.subr.mxu0 0.0
      %980 = vmatpush1.msra.mxu0 %v954
      %981 = vmatprep.subr.mxu0 0.0
      %982 = vmatpush1.msra.mxu0 %v955
      %983 = vmatprep.subr.mxu0 0.0
      %984 = vmatpush1.msra.mxu0 %v956
      %985 = vmatprep.subr.mxu0 0.0
      %986 = vmatpush1.msra.mxu0 %v957
      %987 = vmatprep.subr.mxu0 0.0
      %988 = vmatpush1.msra.mxu0 %v958
      %989 = vmatprep.subr.mxu0 0.0
      %990 = vmatpush1.msra.mxu0 %v959
      %991 = vmatprep.subr.mxu0 0.0
      %992 = vmatpush1.msra.mxu0 %v960
      %993 = vmatprep.subr.mxu0 0.0
      %994 = vmatpush1.msra.mxu0 %v961
      %995 = vmatprep.subr.mxu0 0.0
      %996 = vmatpush1.msra.mxu0 %v962
      %997 = vmatprep.subr.mxu0 0.0
      %998 = vmatpush1.msra.mxu0 0.0
      %999 = vmatprep.subr.mxu0 0.0
      %1000 = vmatpush1.msra.mxu0 0.0
      %1001 = vmatprep.subr.mxu0 0.0
      %1002 = vmatpush1.msra.mxu0 0.0
      %1003 = vmatprep.subr.mxu0 0.0
      %1004 = vmatpush1.msra.mxu0 0.0
      %1005 = vmatprep.subr.mxu0 0.0
      %1006 = vmatpush1.msra.mxu0 0.0
      %1007 = vmatprep.subr.mxu0 0.0
      %1008 = vmatpush1.msra.mxu0 0.0
      %1009 = vmatprep.subr.mxu0 0.0
      %1010 = vmatpush1.msra.mxu0 0.0
      %1011 = vmatprep.subr.mxu0 0.0
      %1012 = vmatpush1.msra.mxu0 0.0
      %1013 = vmatprep.subr.mxu0 0.0
      %1014 = vmatpush1.msra.mxu0 0.0
      %1015 = vmatprep.subr.mxu0 0.0
      %1016 = vmatpush1.msra.mxu0 0.0
      %1017 = vmatprep.subr.mxu0 0.0
      %1018 = vmatpush1.msra.mxu0 0.0
      %1019 = vmatprep.subr.mxu0 0.0
      %1020 = vmatpush1.msra.mxu0 0.0
      %1021 = vmatprep.subr.mxu0 0.0
      %1022 = vmatpush1.msra.mxu0 0.0
      %1023 = vmatprep.subr.mxu0 0.0
      %1024 = vmatpush1.msra.mxu0 0.0
      %1025 = vmatprep.subr.mxu0 0.0
      %1026 = vmatpush1.msra.mxu0 0.0
      %1027 = vmatprep.subr.mxu0 0.0
      %1028 = vmatpush1.msra.mxu0 0.0
      %1029 = vmatprep.mubr.f32.mxu0 0.0
      %1030 = vmatmul.mubr.f32.gmra.mrb[0].mxu0 %v306
      %v1031 = vpop.f32.mrb[0].mxu0
      %v1032 = vadd.f32 0.0, %v1031
      %v1033 = vpop.f32.mrb[0].mxu0
      %1034 = vdwg.mxu0
      %v1035 = vadd.f32 %v964, %v1032
      %1036 = vst.msk [vmem:[%s963] sm:$0x7f] %vm913, %v1035
      %vm1037 = vcmp.eq.f32.partialorder %v777, 2.0
      %vm1038 = vcmp.eq.f32.partialorder %v778, 2.0
      %vm1039 = vcmp.eq.f32.partialorder %v779, 2.0
      %vm1040 = vcmp.eq.f32.partialorder %v780, 2.0
      %vm1041 = vcmp.eq.f32.partialorder %v781, 2.0
      %vm1042 = vcmp.eq.f32.partialorder %v782, 2.0
      %vm1043 = vcmp.eq.f32.partialorder %v783, 2.0
      %vm1044 = vcmp.eq.f32.partialorder %v784, 2.0
      %vm1045 = vcmp.eq.f32.partialorder %v785, 2.0
      %vm1046 = vcmp.eq.f32.partialorder %v786, 2.0
      %vm1047 = vcmp.eq.f32.partialorder %v787, 2.0
      %vm1048 = vcmp.eq.f32.partialorder %v788, 2.0
      %vm1049 = vcmp.eq.f32.partialorder %v789, 2.0
      %vm1050 = vcmp.eq.f32.partialorder %v790, 2.0
      %vm1051 = vcmp.eq.f32.partialorder %v791, 2.0
      %vm1052 = vcmp.eq.f32.partialorder %v792, 2.0
      %v1053 = vsel %vm1037, 1, 0
      %v1054 = vsel %vm1038, 1, 0
      %v1055 = vsel %vm1039, 1, 0
      %v1056 = vsel %vm1040, 1, 0
      %v1057 = vsel %vm1041, 1, 0
      %v1058 = vsel %vm1042, 1, 0
      %v1059 = vsel %vm1043, 1, 0
      %v1060 = vsel %vm1044, 1, 0
      %v1061 = vsel %vm1045, 1, 0
      %v1062 = vsel %vm1046, 1, 0
      %v1063 = vsel %vm1047, 1, 0
      %v1064 = vsel %vm1048, 1, 0
      %v1065 = vsel %vm1049, 1, 0
      %v1066 = vsel %vm1050, 1, 0
      %v1067 = vsel %vm1051, 1, 0
      %v1068 = vsel %vm1052, 1, 0
      %v1069 = vcvt.s32.f32 %v1053
      %v1070 = vcvt.s32.f32 %v1054
      %v1071 = vcvt.s32.f32 %v1055
      %v1072 = vcvt.s32.f32 %v1056
      %v1073 = vcvt.s32.f32 %v1057
      %v1074 = vcvt.s32.f32 %v1058
      %v1075 = vcvt.s32.f32 %v1059
      %v1076 = vcvt.s32.f32 %v1060
      %v1077 = vcvt.s32.f32 %v1061
      %v1078 = vcvt.s32.f32 %v1062
      %v1079 = vcvt.s32.f32 %v1063
      %v1080 = vcvt.s32.f32 %v1064
      %v1081 = vcvt.s32.f32 %v1065
      %v1082 = vcvt.s32.f32 %v1066
      %v1083 = vcvt.s32.f32 %v1067
      %v1084 = vcvt.s32.f32 %v1068
      %s1085 = scalar_lea.vmem %s269, 16
      %v1086 = vld [vmem:[%s1085] sm:$0x7f]
      %1087 = vmatprep.subr.mxu0 0.0
      %1088 = vmatpush1.msra.mxu0 %v1069
      %1089 = vmatprep.subr.mxu0 0.0
      %1090 = vmatpush1.msra.mxu0 %v1070
      %1091 = vmatprep.subr.mxu0 0.0
      %1092 = vmatpush1.msra.mxu0 %v1071
      %1093 = vmatprep.subr.mxu0 0.0
      %1094 = vmatpush1.msra.mxu0 %v1072
      %1095 = vmatprep.subr.mxu0 0.0
      %1096 = vmatpush1.msra.mxu0 %v1073
      %1097 = vmatprep.subr.mxu0 0.0
      %1098 = vmatpush1.msra.mxu0 %v1074
      %1099 = vmatprep.subr.mxu0 0.0
      %1100 = vmatpush1.msra.mxu0 %v1075
      %1101 = vmatprep.subr.mxu0 0.0
      %1102 = vmatpush1.msra.mxu0 %v1076
      %1103 = vmatprep.subr.mxu0 0.0
      %1104 = vmatpush1.msra.mxu0 %v1077
      %1105 = vmatprep.subr.mxu0 0.0
      %1106 = vmatpush1.msra.mxu0 %v1078
      %1107 = vmatprep.subr.mxu0 0.0
      %1108 = vmatpush1.msra.mxu0 %v1079
      %1109 = vmatprep.subr.mxu0 0.0
      %1110 = vmatpush1.msra.mxu0 %v1080
      %1111 = vmatprep.subr.mxu0 0.0
      %1112 = vmatpush1.msra.mxu0 %v1081
      %1113 = vmatprep.subr.mxu0 0.0
      %1114 = vmatpush1.msra.mxu0 %v1082
      %1115 = vmatprep.subr.mxu0 0.0
      %1116 = vmatpush1.msra.mxu0 %v1083
      %1117 = vmatprep.subr.mxu0 0.0
      %1118 = vmatpush1.msra.mxu0 %v1084
      %1119 = vmatprep.subr.mxu0 0.0
      %1120 = vmatpush1.msra.mxu0 0.0
      %1121 = vmatprep.subr.mxu0 0.0
      %1122 = vmatpush1.msra.mxu0 0.0
      %1123 = vmatprep.subr.mxu0 0.0
      %1124 = vmatpush1.msra.mxu0 0.0
      %1125 = vmatprep.subr.mxu0 0.0
      %1126 = vmatpush1.msra.mxu0 0.0
      %1127 = vmatprep.subr.mxu0 0.0
      %1128 = vmatpush1.msra.mxu0 0.0
      %1129 = vmatprep.subr.mxu0 0.0
      %1130 = vmatpush1.msra.mxu0 0.0
      %1131 = vmatprep.subr.mxu0 0.0
      %1132 = vmatpush1.msra.mxu0 0.0
      %1133 = vmatprep.subr.mxu0 0.0
      %1134 = vmatpush1.msra.mxu0 0.0
      %1135 = vmatprep.subr.mxu0 0.0
      %1136 = vmatpush1.msra.mxu0 0.0
      %1137 = vmatprep.subr.mxu0 0.0
      %1138 = vmatpush1.msra.mxu0 0.0
      %1139 = vmatprep.subr.mxu0 0.0
      %1140 = vmatpush1.msra.mxu0 0.0
      %1141 = vmatprep.subr.mxu0 0.0
      %1142 = vmatpush1.msra.mxu0 0.0
      %1143 = vmatprep.subr.mxu0 0.0
      %1144 = vmatpush1.msra.mxu0 0.0
      %1145 = vmatprep.subr.mxu0 0.0
      %1146 = vmatpush1.msra.mxu0 0.0
      %1147 = vmatprep.subr.mxu0 0.0
      %1148 = vmatpush1.msra.mxu0 0.0
      %1149 = vmatprep.subr.mxu0 0.0
      %1150 = vmatpush1.msra.mxu0 0.0
      %1151 = vmatprep.mubr.f32.mxu0 0.0
      %1152 = vmatmul.mubr.f32.gmra.mrb[0].mxu0 %v306
      %v1153 = vpop.f32.mrb[0].mxu0
      %v1154 = vadd.f32 0.0, %v1153
      %v1155 = vpop.f32.mrb[0].mxu0
      %1156 = vdwg.mxu0
      %v1157 = vadd.f32 %v1086, %v1154
      %1158 = vst.msk [vmem:[%s1085] sm:$0x7f] %vm913, %v1157
      %vm1159 = vcmp.eq.f32.partialorder %v777, 3.0
      %vm1160 = vcmp.eq.f32.partialorder %v778, 3.0
      %vm1161 = vcmp.eq.f32.partialorder %v779, 3.0
      %vm1162 = vcmp.eq.f32.partialorder %v780, 3.0
      %vm1163 = vcmp.eq.f32.partialorder %v781, 3.0
      %vm1164 = vcmp.eq.f32.partialorder %v782, 3.0
      %vm1165 = vcmp.eq.f32.partialorder %v783, 3.0
      %vm1166 = vcmp.eq.f32.partialorder %v784, 3.0
      %vm1167 = vcmp.eq.f32.partialorder %v785, 3.0
      %vm1168 = vcmp.eq.f32.partialorder %v786, 3.0
      %vm1169 = vcmp.eq.f32.partialorder %v787, 3.0
      %vm1170 = vcmp.eq.f32.partialorder %v788, 3.0
      %vm1171 = vcmp.eq.f32.partialorder %v789, 3.0
      %vm1172 = vcmp.eq.f32.partialorder %v790, 3.0
      %vm1173 = vcmp.eq.f32.partialorder %v791, 3.0
      %vm1174 = vcmp.eq.f32.partialorder %v792, 3.0
      %v1175 = vsel %vm1159, 1, 0
      %v1176 = vsel %vm1160, 1, 0
      %v1177 = vsel %vm1161, 1, 0
      %v1178 = vsel %vm1162, 1, 0
      %v1179 = vsel %vm1163, 1, 0
      %v1180 = vsel %vm1164, 1, 0
      %v1181 = vsel %vm1165, 1, 0
      %v1182 = vsel %vm1166, 1, 0
      %v1183 = vsel %vm1167, 1, 0
      %v1184 = vsel %vm1168, 1, 0
      %v1185 = vsel %vm1169, 1, 0
      %v1186 = vsel %vm1170, 1, 0
      %v1187 = vsel %vm1171, 1, 0
      %v1188 = vsel %vm1172, 1, 0
      %v1189 = vsel %vm1173, 1, 0
      %v1190 = vsel %vm1174, 1, 0
      %v1191 = vcvt.s32.f32 %v1175
      %v1192 = vcvt.s32.f32 %v1176
      %v1193 = vcvt.s32.f32 %v1177
      %v1194 = vcvt.s32.f32 %v1178
      %v1195 = vcvt.s32.f32 %v1179
      %v1196 = vcvt.s32.f32 %v1180
      %v1197 = vcvt.s32.f32 %v1181
      %v1198 = vcvt.s32.f32 %v1182
      %v1199 = vcvt.s32.f32 %v1183
      %v1200 = vcvt.s32.f32 %v1184
      %v1201 = vcvt.s32.f32 %v1185
      %v1202 = vcvt.s32.f32 %v1186
      %v1203 = vcvt.s32.f32 %v1187
      %v1204 = vcvt.s32.f32 %v1188
      %v1205 = vcvt.s32.f32 %v1189
      %v1206 = vcvt.s32.f32 %v1190
      %s1207 = scalar_lea.vmem %s269, 24
      %v1208 = vld [vmem:[%s1207] sm:$0x7f]
      %1209 = vmatprep.subr.mxu0 0.0
      %1210 = vmatpush1.msra.mxu0 %v1191
      %1211 = vmatprep.subr.mxu0 0.0
      %1212 = vmatpush1.msra.mxu0 %v1192
      %1213 = vmatprep.subr.mxu0 0.0
      %1214 = vmatpush1.msra.mxu0 %v1193
      %1215 = vmatprep.subr.mxu0 0.0
      %1216 = vmatpush1.msra.mxu0 %v1194
      %1217 = vmatprep.subr.mxu0 0.0
      %1218 = vmatpush1.msra.mxu0 %v1195
      %1219 = vmatprep.subr.mxu0 0.0
      %1220 = vmatpush1.msra.mxu0 %v1196
      %1221 = vmatprep.subr.mxu0 0.0
      %1222 = vmatpush1.msra.mxu0 %v1197
      %1223 = vmatprep.subr.mxu0 0.0
      %1224 = vmatpush1.msra.mxu0 %v1198
      %1225 = vmatprep.subr.mxu0 0.0
      %1226 = vmatpush1.msra.mxu0 %v1199
      %1227 = vmatprep.subr.mxu0 0.0
      %1228 = vmatpush1.msra.mxu0 %v1200
      %1229 = vmatprep.subr.mxu0 0.0
      %1230 = vmatpush1.msra.mxu0 %v1201
      %1231 = vmatprep.subr.mxu0 0.0
      %1232 = vmatpush1.msra.mxu0 %v1202
      %1233 = vmatprep.subr.mxu0 0.0
      %1234 = vmatpush1.msra.mxu0 %v1203
      %1235 = vmatprep.subr.mxu0 0.0
      %1236 = vmatpush1.msra.mxu0 %v1204
      %1237 = vmatprep.subr.mxu0 0.0
      %1238 = vmatpush1.msra.mxu0 %v1205
      %1239 = vmatprep.subr.mxu0 0.0
      %1240 = vmatpush1.msra.mxu0 %v1206
      %1241 = vmatprep.subr.mxu0 0.0
      %1242 = vmatpush1.msra.mxu0 0.0
      %1243 = vmatprep.subr.mxu0 0.0
      %1244 = vmatpush1.msra.mxu0 0.0
      %1245 = vmatprep.subr.mxu0 0.0
      %1246 = vmatpush1.msra.mxu0 0.0
      %1247 = vmatprep.subr.mxu0 0.0
      %1248 = vmatpush1.msra.mxu0 0.0
      %1249 = vmatprep.subr.mxu0 0.0
      %1250 = vmatpush1.msra.mxu0 0.0
      %1251 = vmatprep.subr.mxu0 0.0
      %1252 = vmatpush1.msra.mxu0 0.0
      %1253 = vmatprep.subr.mxu0 0.0
      %1254 = vmatpush1.msra.mxu0 0.0
      %1255 = vmatprep.subr.mxu0 0.0
      %1256 = vmatpush1.msra.mxu0 0.0
      %1257 = vmatprep.subr.mxu0 0.0
      %1258 = vmatpush1.msra.mxu0 0.0
      %1259 = vmatprep.subr.mxu0 0.0
      %1260 = vmatpush1.msra.mxu0 0.0
      %1261 = vmatprep.subr.mxu0 0.0
      %1262 = vmatpush1.msra.mxu0 0.0
      %1263 = vmatprep.subr.mxu0 0.0
      %1264 = vmatpush1.msra.mxu0 0.0
      %1265 = vmatprep.subr.mxu0 0.0
      %1266 = vmatpush1.msra.mxu0 0.0
      %1267 = vmatprep.subr.mxu0 0.0
      %1268 = vmatpush1.msra.mxu0 0.0
      %1269 = vmatprep.subr.mxu0 0.0
      %1270 = vmatpush1.msra.mxu0 0.0
      %1271 = vmatprep.subr.mxu0 0.0
      %1272 = vmatpush1.msra.mxu0 0.0
      %1273 = vmatprep.mubr.f32.mxu0 0.0
      %1274 = vmatmul.mubr.f32.gmra.mrb[0].mxu0 %v306
      %v1275 = vpop.f32.mrb[0].mxu0
      %v1276 = vadd.f32 0.0, %v1275
      %v1277 = vpop.f32.mrb[0].mxu0
      %1278 = vdwg.mxu0
      %v1279 = vadd.f32 %v1208, %v1276
      %1280 = vst.msk [vmem:[%s1207] sm:$0x7f] %vm913, %v1279
      %vm1281 = vcmp.eq.f32.partialorder %v777, 4.0
      %vm1282 = vcmp.eq.f32.partialorder %v778, 4.0
      %vm1283 = vcmp.eq.f32.partialorder %v779, 4.0
      %vm1284 = vcmp.eq.f32.partialorder %v780, 4.0
      %vm1285 = vcmp.eq.f32.partialorder %v781, 4.0
      %vm1286 = vcmp.eq.f32.partialorder %v782, 4.0
      %vm1287 = vcmp.eq.f32.partialorder %v783, 4.0
      %vm1288 = vcmp.eq.f32.partialorder %v784, 4.0
      %vm1289 = vcmp.eq.f32.partialorder %v785, 4.0
      %vm1290 = vcmp.eq.f32.partialorder %v786, 4.0
      %vm1291 = vcmp.eq.f32.partialorder %v787, 4.0
      %vm1292 = vcmp.eq.f32.partialorder %v788, 4.0
      %vm1293 = vcmp.eq.f32.partialorder %v789, 4.0
      %vm1294 = vcmp.eq.f32.partialorder %v790, 4.0
      %vm1295 = vcmp.eq.f32.partialorder %v791, 4.0
      %vm1296 = vcmp.eq.f32.partialorder %v792, 4.0
      %v1297 = vsel %vm1281, 1, 0
      %v1298 = vsel %vm1282, 1, 0
      %v1299 = vsel %vm1283, 1, 0
      %v1300 = vsel %vm1284, 1, 0
      %v1301 = vsel %vm1285, 1, 0
      %v1302 = vsel %vm1286, 1, 0
      %v1303 = vsel %vm1287, 1, 0
      %v1304 = vsel %vm1288, 1, 0
      %v1305 = vsel %vm1289, 1, 0
      %v1306 = vsel %vm1290, 1, 0
      %v1307 = vsel %vm1291, 1, 0
      %v1308 = vsel %vm1292, 1, 0
      %v1309 = vsel %vm1293, 1, 0
      %v1310 = vsel %vm1294, 1, 0
      %v1311 = vsel %vm1295, 1, 0
      %v1312 = vsel %vm1296, 1, 0
      %v1313 = vcvt.s32.f32 %v1297
      %v1314 = vcvt.s32.f32 %v1298
      %v1315 = vcvt.s32.f32 %v1299
      %v1316 = vcvt.s32.f32 %v1300
      %v1317 = vcvt.s32.f32 %v1301
      %v1318 = vcvt.s32.f32 %v1302
      %v1319 = vcvt.s32.f32 %v1303
      %v1320 = vcvt.s32.f32 %v1304
      %v1321 = vcvt.s32.f32 %v1305
      %v1322 = vcvt.s32.f32 %v1306
      %v1323 = vcvt.s32.f32 %v1307
      %v1324 = vcvt.s32.f32 %v1308
      %v1325 = vcvt.s32.f32 %v1309
      %v1326 = vcvt.s32.f32 %v1310
      %v1327 = vcvt.s32.f32 %v1311
      %v1328 = vcvt.s32.f32 %v1312
      %s1329 = scalar_lea.vmem %s269, 32
      %v1330 = vld [vmem:[%s1329] sm:$0x7f]
      %1331 = vmatprep.subr.mxu0 0.0
      %1332 = vmatpush1.msra.mxu0 %v1313
      %1333 = vmatprep.subr.mxu0 0.0
      %1334 = vmatpush1.msra.mxu0 %v1314
      %1335 = vmatprep.subr.mxu0 0.0
      %1336 = vmatpush1.msra.mxu0 %v1315
      %1337 = vmatprep.subr.mxu0 0.0
      %1338 = vmatpush1.msra.mxu0 %v1316
      %1339 = vmatprep.subr.mxu0 0.0
      %1340 = vmatpush1.msra.mxu0 %v1317
      %1341 = vmatprep.subr.mxu0 0.0
      %1342 = vmatpush1.msra.mxu0 %v1318
      %1343 = vmatprep.subr.mxu0 0.0
      %1344 = vmatpush1.msra.mxu0 %v1319
      %1345 = vmatprep.subr.mxu0 0.0
      %1346 = vmatpush1.msra.mxu0 %v1320
      %1347 = vmatprep.subr.mxu0 0.0
      %1348 = vmatpush1.msra.mxu0 %v1321
      %1349 = vmatprep.subr.mxu0 0.0
      %1350 = vmatpush1.msra.mxu0 %v1322
      %1351 = vmatprep.subr.mxu0 0.0
      %1352 = vmatpush1.msra.mxu0 %v1323
      %1353 = vmatprep.subr.mxu0 0.0
      %1354 = vmatpush1.msra.mxu0 %v1324
      %1355 = vmatprep.subr.mxu0 0.0
      %1356 = vmatpush1.msra.mxu0 %v1325
      %1357 = vmatprep.subr.mxu0 0.0
      %1358 = vmatpush1.msra.mxu0 %v1326
      %1359 = vmatprep.subr.mxu0 0.0
      %1360 = vmatpush1.msra.mxu0 %v1327
      %1361 = vmatprep.subr.mxu0 0.0
      %1362 = vmatpush1.msra.mxu0 %v1328
      %1363 = vmatprep.subr.mxu0 0.0
      %1364 = vmatpush1.msra.mxu0 0.0
      %1365 = vmatprep.subr.mxu0 0.0
      %1366 = vmatpush1.msra.mxu0 0.0
      %1367 = vmatprep.subr.mxu0 0.0
      %1368 = vmatpush1.msra.mxu0 0.0
      %1369 = vmatprep.subr.mxu0 0.0
      %1370 = vmatpush1.msra.mxu0 0.0
      %1371 = vmatprep.subr.mxu0 0.0
      %1372 = vmatpush1.msra.mxu0 0.0
      %1373 = vmatprep.subr.mxu0 0.0
      %1374 = vmatpush1.msra.mxu0 0.0
      %1375 = vmatprep.subr.mxu0 0.0
      %1376 = vmatpush1.msra.mxu0 0.0
      %1377 = vmatprep.subr.mxu0 0.0
      %1378 = vmatpush1.msra.mxu0 0.0
      %1379 = vmatprep.subr.mxu0 0.0
      %1380 = vmatpush1.msra.mxu0 0.0
      %1381 = vmatprep.subr.mxu0 0.0
      %1382 = vmatpush1.msra.mxu0 0.0
      %1383 = vmatprep.subr.mxu0 0.0
      %1384 = vmatpush1.msra.mxu0 0.0
      %1385 = vmatprep.subr.mxu0 0.0
      %1386 = vmatpush1.msra.mxu0 0.0
      %1387 = vmatprep.subr.mxu0 0.0
      %1388 = vmatpush1.msra.mxu0 0.0
      %1389 = vmatprep.subr.mxu0 0.0
      %1390 = vmatpush1.msra.mxu0 0.0
      %1391 = vmatprep.subr.mxu0 0.0
      %1392 = vmatpush1.msra.mxu0 0.0
      %1393 = vmatprep.subr.mxu0 0.0
      %1394 = vmatpush1.msra.mxu0 0.0
      %1395 = vmatprep.mubr.f32.mxu0 0.0
      %1396 = vmatmul.mubr.f32.gmra.mrb[0].mxu0 %v306
      %v1397 = vpop.f32.mrb[0].mxu0
      %v1398 = vadd.f32 0.0, %v1397
      %v1399 = vpop.f32.mrb[0].mxu0
      %1400 = vdwg.mxu0
      %v1401 = vadd.f32 %v1330, %v1398
      %1402 = vst.msk [vmem:[%s1329] sm:$0x7f] %vm913, %v1401
      %vm1403 = vcmp.eq.f32.partialorder %v777, 5.0
      %vm1404 = vcmp.eq.f32.partialorder %v778, 5.0
      %vm1405 = vcmp.eq.f32.partialorder %v779, 5.0
      %vm1406 = vcmp.eq.f32.partialorder %v780, 5.0
      %vm1407 = vcmp.eq.f32.partialorder %v781, 5.0
      %vm1408 = vcmp.eq.f32.partialorder %v782, 5.0
      %vm1409 = vcmp.eq.f32.partialorder %v783, 5.0
      %vm1410 = vcmp.eq.f32.partialorder %v784, 5.0
      %vm1411 = vcmp.eq.f32.partialorder %v785, 5.0
      %vm1412 = vcmp.eq.f32.partialorder %v786, 5.0
      %vm1413 = vcmp.eq.f32.partialorder %v787, 5.0
      %vm1414 = vcmp.eq.f32.partialorder %v788, 5.0
      %vm1415 = vcmp.eq.f32.partialorder %v789, 5.0
      %vm1416 = vcmp.eq.f32.partialorder %v790, 5.0
      %vm1417 = vcmp.eq.f32.partialorder %v791, 5.0
      %vm1418 = vcmp.eq.f32.partialorder %v792, 5.0
      %v1419 = vsel %vm1403, 1, 0
      %v1420 = vsel %vm1404, 1, 0
      %v1421 = vsel %vm1405, 1, 0
      %v1422 = vsel %vm1406, 1, 0
      %v1423 = vsel %vm1407, 1, 0
      %v1424 = vsel %vm1408, 1, 0
      %v1425 = vsel %vm1409, 1, 0
      %v1426 = vsel %vm1410, 1, 0
      %v1427 = vsel %vm1411, 1, 0
      %v1428 = vsel %vm1412, 1, 0
      %v1429 = vsel %vm1413, 1, 0
      %v1430 = vsel %vm1414, 1, 0
      %v1431 = vsel %vm1415, 1, 0
      %v1432 = vsel %vm1416, 1, 0
      %v1433 = vsel %vm1417, 1, 0
      %v1434 = vsel %vm1418, 1, 0
      %v1435 = vcvt.s32.f32 %v1419
      %v1436 = vcvt.s32.f32 %v1420
      %v1437 = vcvt.s32.f32 %v1421
      %v1438 = vcvt.s32.f32 %v1422
      %v1439 = vcvt.s32.f32 %v1423
      %v1440 = vcvt.s32.f32 %v1424
      %v1441 = vcvt.s32.f32 %v1425
      %v1442 = vcvt.s32.f32 %v1426
      %v1443 = vcvt.s32.f32 %v1427
      %v1444 = vcvt.s32.f32 %v1428
      %v1445 = vcvt.s32.f32 %v1429
      %v1446 = vcvt.s32.f32 %v1430
      %v1447 = vcvt.s32.f32 %v1431
      %v1448 = vcvt.s32.f32 %v1432
      %v1449 = vcvt.s32.f32 %v1433
      %v1450 = vcvt.s32.f32 %v1434
      %s1451 = scalar_lea.vmem %s269, 40
      %v1452 = vld [vmem:[%s1451] sm:$0x7f]
      %1453 = vmatprep.subr.mxu0 0.0
      %1454 = vmatpush1.msra.mxu0 %v1435
      %1455 = vmatprep.subr.mxu0 0.0
      %1456 = vmatpush1.msra.mxu0 %v1436
      %1457 = vmatprep.subr.mxu0 0.0
      %1458 = vmatpush1.msra.mxu0 %v1437
      %1459 = vmatprep.subr.mxu0 0.0
      %1460 = vmatpush1.msra.mxu0 %v1438
      %1461 = vmatprep.subr.mxu0 0.0
      %1462 = vmatpush1.msra.mxu0 %v1439
      %1463 = vmatprep.subr.mxu0 0.0
      %1464 = vmatpush1.msra.mxu0 %v1440
      %1465 = vmatprep.subr.mxu0 0.0
      %1466 = vmatpush1.msra.mxu0 %v1441
      %1467 = vmatprep.subr.mxu0 0.0
      %1468 = vmatpush1.msra.mxu0 %v1442
      %1469 = vmatprep.subr.mxu0 0.0
      %1470 = vmatpush1.msra.mxu0 %v1443
      %1471 = vmatprep.subr.mxu0 0.0
      %1472 = vmatpush1.msra.mxu0 %v1444
      %1473 = vmatprep.subr.mxu0 0.0
      %1474 = vmatpush1.msra.mxu0 %v1445
      %1475 = vmatprep.subr.mxu0 0.0
      %1476 = vmatpush1.msra.mxu0 %v1446
      %1477 = vmatprep.subr.mxu0 0.0
      %1478 = vmatpush1.msra.mxu0 %v1447
      %1479 = vmatprep.subr.mxu0 0.0
      %1480 = vmatpush1.msra.mxu0 %v1448
      %1481 = vmatprep.subr.mxu0 0.0
      %1482 = vmatpush1.msra.mxu0 %v1449
      %1483 = vmatprep.subr.mxu0 0.0
      %1484 = vmatpush1.msra.mxu0 %v1450
      %1485 = vmatprep.subr.mxu0 0.0
      %1486 = vmatpush1.msra.mxu0 0.0
      %1487 = vmatprep.subr.mxu0 0.0
      %1488 = vmatpush1.msra.mxu0 0.0
      %1489 = vmatprep.subr.mxu0 0.0
      %1490 = vmatpush1.msra.mxu0 0.0
      %1491 = vmatprep.subr.mxu0 0.0
      %1492 = vmatpush1.msra.mxu0 0.0
      %1493 = vmatprep.subr.mxu0 0.0
      %1494 = vmatpush1.msra.mxu0 0.0
      %1495 = vmatprep.subr.mxu0 0.0
      %1496 = vmatpush1.msra.mxu0 0.0
      %1497 = vmatprep.subr.mxu0 0.0
      %1498 = vmatpush1.msra.mxu0 0.0
      %1499 = vmatprep.subr.mxu0 0.0
      %1500 = vmatpush1.msra.mxu0 0.0
      %1501 = vmatprep.subr.mxu0 0.0
      %1502 = vmatpush1.msra.mxu0 0.0
      %1503 = vmatprep.subr.mxu0 0.0
      %1504 = vmatpush1.msra.mxu0 0.0
      %1505 = vmatprep.subr.mxu0 0.0
      %1506 = vmatpush1.msra.mxu0 0.0
      %1507 = vmatprep.subr.mxu0 0.0
      %1508 = vmatpush1.msra.mxu0 0.0
      %1509 = vmatprep.subr.mxu0 0.0
      %1510 = vmatpush1.msra.mxu0 0.0
      %1511 = vmatprep.subr.mxu0 0.0
      %1512 = vmatpush1.msra.mxu0 0.0
      %1513 = vmatprep.subr.mxu0 0.0
      %1514 = vmatpush1.msra.mxu0 0.0
      %1515 = vmatprep.subr.mxu0 0.0
      %1516 = vmatpush1.msra.mxu0 0.0
      %1517 = vmatprep.mubr.f32.mxu0 0.0
      %1518 = vmatmul.mubr.f32.gmra.mrb[0].mxu0 %v306
      %v1519 = vpop.f32.mrb[0].mxu0
      %v1520 = vadd.f32 0.0, %v1519
      %v1521 = vpop.f32.mrb[0].mxu0
      %1522 = vdwg.mxu0
      %v1523 = vadd.f32 %v1452, %v1520
      %1524 = vst.msk [vmem:[%s1451] sm:$0x7f] %vm913, %v1523
      %vm1525 = vcmp.eq.f32.partialorder %v777, 6.0
      %vm1526 = vcmp.eq.f32.partialorder %v778, 6.0
      %vm1527 = vcmp.eq.f32.partialorder %v779, 6.0
      %vm1528 = vcmp.eq.f32.partialorder %v780, 6.0
      %vm1529 = vcmp.eq.f32.partialorder %v781, 6.0
      %vm1530 = vcmp.eq.f32.partialorder %v782, 6.0
      %vm1531 = vcmp.eq.f32.partialorder %v783, 6.0
      %vm1532 = vcmp.eq.f32.partialorder %v784, 6.0
      %vm1533 = vcmp.eq.f32.partialorder %v785, 6.0
      %vm1534 = vcmp.eq.f32.partialorder %v786, 6.0
      %vm1535 = vcmp.eq.f32.partialorder %v787, 6.0
      %vm1536 = vcmp.eq.f32.partialorder %v788, 6.0
      %vm1537 = vcmp.eq.f32.partialorder %v789, 6.0
      %vm1538 = vcmp.eq.f32.partialorder %v790, 6.0
      %vm1539 = vcmp.eq.f32.partialorder %v791, 6.0
      %vm1540 = vcmp.eq.f32.partialorder %v792, 6.0
      %v1541 = vsel %vm1525, 1, 0
      %v1542 = vsel %vm1526, 1, 0
      %v1543 = vsel %vm1527, 1, 0
      %v1544 = vsel %vm1528, 1, 0
      %v1545 = vsel %vm1529, 1, 0
      %v1546 = vsel %vm1530, 1, 0
      %v1547 = vsel %vm1531, 1, 0
      %v1548 = vsel %vm1532, 1, 0
      %v1549 = vsel %vm1533, 1, 0
      %v1550 = vsel %vm1534, 1, 0
      %v1551 = vsel %vm1535, 1, 0
      %v1552 = vsel %vm1536, 1, 0
      %v1553 = vsel %vm1537, 1, 0
      %v1554 = vsel %vm1538, 1, 0
      %v1555 = vsel %vm1539, 1, 0
      %v1556 = vsel %vm1540, 1, 0
      %v1557 = vcvt.s32.f32 %v1541
      %v1558 = vcvt.s32.f32 %v1542
      %v1559 = vcvt.s32.f32 %v1543
      %v1560 = vcvt.s32.f32 %v1544
      %v1561 = vcvt.s32.f32 %v1545
      %v1562 = vcvt.s32.f32 %v1546
      %v1563 = vcvt.s32.f32 %v1547
      %v1564 = vcvt.s32.f32 %v1548
      %v1565 = vcvt.s32.f32 %v1549
      %v1566 = vcvt.s32.f32 %v1550
      %v1567 = vcvt.s32.f32 %v1551
      %v1568 = vcvt.s32.f32 %v1552
      %v1569 = vcvt.s32.f32 %v1553
      %v1570 = vcvt.s32.f32 %v1554
      %v1571 = vcvt.s32.f32 %v1555
      %v1572 = vcvt.s32.f32 %v1556
      %s1573 = scalar_lea.vmem %s269, 48
      %v1574 = vld [vmem:[%s1573] sm:$0x7f]
      %1575 = vmatprep.subr.mxu0 0.0
      %1576 = vmatpush1.msra.mxu0 %v1557
      %1577 = vmatprep.subr.mxu0 0.0
      %1578 = vmatpush1.msra.mxu0 %v1558
      %1579 = vmatprep.subr.mxu0 0.0
      %1580 = vmatpush1.msra.mxu0 %v1559
      %1581 = vmatprep.subr.mxu0 0.0
      %1582 = vmatpush1.msra.mxu0 %v1560
      %1583 = vmatprep.subr.mxu0 0.0
      %1584 = vmatpush1.msra.mxu0 %v1561
      %1585 = vmatprep.subr.mxu0 0.0
      %1586 = vmatpush1.msra.mxu0 %v1562
      %1587 = vmatprep.subr.mxu0 0.0
      %1588 = vmatpush1.msra.mxu0 %v1563
      %1589 = vmatprep.subr.mxu0 0.0
      %1590 = vmatpush1.msra.mxu0 %v1564
      %1591 = vmatprep.subr.mxu0 0.0
      %1592 = vmatpush1.msra.mxu0 %v1565
      %1593 = vmatprep.subr.mxu0 0.0
      %1594 = vmatpush1.msra.mxu0 %v1566
      %1595 = vmatprep.subr.mxu0 0.0
      %1596 = vmatpush1.msra.mxu0 %v1567
      %1597 = vmatprep.subr.mxu0 0.0
      %1598 = vmatpush1.msra.mxu0 %v1568
      %1599 = vmatprep.subr.mxu0 0.0
      %1600 = vmatpush1.msra.mxu0 %v1569
      %1601 = vmatprep.subr.mxu0 0.0
      %1602 = vmatpush1.msra.mxu0 %v1570
      %1603 = vmatprep.subr.mxu0 0.0
      %1604 = vmatpush1.msra.mxu0 %v1571
      %1605 = vmatprep.subr.mxu0 0.0
      %1606 = vmatpush1.msra.mxu0 %v1572
      %1607 = vmatprep.subr.mxu0 0.0
      %1608 = vmatpush1.msra.mxu0 0.0
      %1609 = vmatprep.subr.mxu0 0.0
      %1610 = vmatpush1.msra.mxu0 0.0
      %1611 = vmatprep.subr.mxu0 0.0
      %1612 = vmatpush1.msra.mxu0 0.0
      %1613 = vmatprep.subr.mxu0 0.0
      %1614 = vmatpush1.msra.mxu0 0.0
      %1615 = vmatprep.subr.mxu0 0.0
      %1616 = vmatpush1.msra.mxu0 0.0
      %1617 = vmatprep.subr.mxu0 0.0
      %1618 = vmatpush1.msra.mxu0 0.0
      %1619 = vmatprep.subr.mxu0 0.0
      %1620 = vmatpush1.msra.mxu0 0.0
      %1621 = vmatprep.subr.mxu0 0.0
      %1622 = vmatpush1.msra.mxu0 0.0
      %1623 = vmatprep.subr.mxu0 0.0
      %1624 = vmatpush1.msra.mxu0 0.0
      %1625 = vmatprep.subr.mxu0 0.0
      %1626 = vmatpush1.msra.mxu0 0.0
      %1627 = vmatprep.subr.mxu0 0.0
      %1628 = vmatpush1.msra.mxu0 0.0
      %1629 = vmatprep.subr.mxu0 0.0
      %1630 = vmatpush1.msra.mxu0 0.0
      %1631 = vmatprep.subr.mxu0 0.0
      %1632 = vmatpush1.msra.mxu0 0.0
      %1633 = vmatprep.subr.mxu0 0.0
      %1634 = vmatpush1.msra.mxu0 0.0
      %1635 = vmatprep.subr.mxu0 0.0
      %1636 = vmatpush1.msra.mxu0 0.0
      %1637 = vmatprep.subr.mxu0 0.0
      %1638 = vmatpush1.msra.mxu0 0.0
      %1639 = vmatprep.mubr.f32.mxu0 0.0
      %1640 = vmatmul.mubr.f32.gmra.mrb[0].mxu0 %v306
      %v1641 = vpop.f32.mrb[0].mxu0
      %v1642 = vadd.f32 0.0, %v1641
      %v1643 = vpop.f32.mrb[0].mxu0
      %1644 = vdwg.mxu0
      %v1645 = vadd.f32 %v1574, %v1642
      %1646 = vst.msk [vmem:[%s1573] sm:$0x7f] %vm913, %v1645
      %vm1647 = vcmp.eq.f32.partialorder %v777, 7.0
      %vm1648 = vcmp.eq.f32.partialorder %v778, 7.0
      %vm1649 = vcmp.eq.f32.partialorder %v779, 7.0
      %vm1650 = vcmp.eq.f32.partialorder %v780, 7.0
      %vm1651 = vcmp.eq.f32.partialorder %v781, 7.0
      %vm1652 = vcmp.eq.f32.partialorder %v782, 7.0
      %vm1653 = vcmp.eq.f32.partialorder %v783, 7.0
      %vm1654 = vcmp.eq.f32.partialorder %v784, 7.0
      %vm1655 = vcmp.eq.f32.partialorder %v785, 7.0
      %vm1656 = vcmp.eq.f32.partialorder %v786, 7.0
      %vm1657 = vcmp.eq.f32.partialorder %v787, 7.0
      %vm1658 = vcmp.eq.f32.partialorder %v788, 7.0
      %vm1659 = vcmp.eq.f32.partialorder %v789, 7.0
      %vm1660 = vcmp.eq.f32.partialorder %v790, 7.0
      %vm1661 = vcmp.eq.f32.partialorder %v791, 7.0
      %vm1662 = vcmp.eq.f32.partialorder %v792, 7.0
      %v1663 = vsel %vm1647, 1, 0
      %v1664 = vsel %vm1648, 1, 0
      %v1665 = vsel %vm1649, 1, 0
      %v1666 = vsel %vm1650, 1, 0
      %v1667 = vsel %vm1651, 1, 0
      %v1668 = vsel %vm1652, 1, 0
      %v1669 = vsel %vm1653, 1, 0
      %v1670 = vsel %vm1654, 1, 0
      %v1671 = vsel %vm1655, 1, 0
      %v1672 = vsel %vm1656, 1, 0
      %v1673 = vsel %vm1657, 1, 0
      %v1674 = vsel %vm1658, 1, 0
      %v1675 = vsel %vm1659, 1, 0
      %v1676 = vsel %vm1660, 1, 0
      %v1677 = vsel %vm1661, 1, 0
      %v1678 = vsel %vm1662, 1, 0
      %v1679 = vcvt.s32.f32 %v1663
      %v1680 = vcvt.s32.f32 %v1664
      %v1681 = vcvt.s32.f32 %v1665
      %v1682 = vcvt.s32.f32 %v1666
      %v1683 = vcvt.s32.f32 %v1667
      %v1684 = vcvt.s32.f32 %v1668
      %v1685 = vcvt.s32.f32 %v1669
      %v1686 = vcvt.s32.f32 %v1670
      %v1687 = vcvt.s32.f32 %v1671
      %v1688 = vcvt.s32.f32 %v1672
      %v1689 = vcvt.s32.f32 %v1673
      %v1690 = vcvt.s32.f32 %v1674
      %v1691 = vcvt.s32.f32 %v1675
      %v1692 = vcvt.s32.f32 %v1676
      %v1693 = vcvt.s32.f32 %v1677
      %v1694 = vcvt.s32.f32 %v1678
      %s1695 = scalar_lea.vmem %s269, 56
      %v1696 = vld [vmem:[%s1695] sm:$0x7f]
      %1697 = vmatprep.subr.mxu0 0.0
      %1698 = vmatpush1.msra.mxu0 %v1679
      %1699 = vmatprep.subr.mxu0 0.0
      %1700 = vmatpush1.msra.mxu0 %v1680
      %1701 = vmatprep.subr.mxu0 0.0
      %1702 = vmatpush1.msra.mxu0 %v1681
      %1703 = vmatprep.subr.mxu0 0.0
      %1704 = vmatpush1.msra.mxu0 %v1682
      %1705 = vmatprep.subr.mxu0 0.0
      %1706 = vmatpush1.msra.mxu0 %v1683
      %1707 = vmatprep.subr.mxu0 0.0
      %1708 = vmatpush1.msra.mxu0 %v1684
      %1709 = vmatprep.subr.mxu0 0.0
      %1710 = vmatpush1.msra.mxu0 %v1685
      %1711 = vmatprep.subr.mxu0 0.0
      %1712 = vmatpush1.msra.mxu0 %v1686
      %1713 = vmatprep.subr.mxu0 0.0
      %1714 = vmatpush1.msra.mxu0 %v1687
      %1715 = vmatprep.subr.mxu0 0.0
      %1716 = vmatpush1.msra.mxu0 %v1688
      %1717 = vmatprep.subr.mxu0 0.0
      %1718 = vmatpush1.msra.mxu0 %v1689
      %1719 = vmatprep.subr.mxu0 0.0
      %1720 = vmatpush1.msra.mxu0 %v1690
      %1721 = vmatprep.subr.mxu0 0.0
      %1722 = vmatpush1.msra.mxu0 %v1691
      %1723 = vmatprep.subr.mxu0 0.0
      %1724 = vmatpush1.msra.mxu0 %v1692
      %1725 = vmatprep.subr.mxu0 0.0
      %1726 = vmatpush1.msra.mxu0 %v1693
      %1727 = vmatprep.subr.mxu0 0.0
      %1728 = vmatpush1.msra.mxu0 %v1694
      %1729 = vmatprep.subr.mxu0 0.0
      %1730 = vmatpush1.msra.mxu0 0.0
      %1731 = vmatprep.subr.mxu0 0.0
      %1732 = vmatpush1.msra.mxu0 0.0
      %1733 = vmatprep.subr.mxu0 0.0
      %1734 = vmatpush1.msra.mxu0 0.0
      %1735 = vmatprep.subr.mxu0 0.0
      %1736 = vmatpush1.msra.mxu0 0.0
      %1737 = vmatprep.subr.mxu0 0.0
      %1738 = vmatpush1.msra.mxu0 0.0
      %1739 = vmatprep.subr.mxu0 0.0
      %1740 = vmatpush1.msra.mxu0 0.0
      %1741 = vmatprep.subr.mxu0 0.0
      %1742 = vmatpush1.msra.mxu0 0.0
      %1743 = vmatprep.subr.mxu0 0.0
      %1744 = vmatpush1.msra.mxu0 0.0
      %1745 = vmatprep.subr.mxu0 0.0
      %1746 = vmatpush1.msra.mxu0 0.0
      %1747 = vmatprep.subr.mxu0 0.0
      %1748 = vmatpush1.msra.mxu0 0.0
      %1749 = vmatprep.subr.mxu0 0.0
      %1750 = vmatpush1.msra.mxu0 0.0
      %1751 = vmatprep.subr.mxu0 0.0
      %1752 = vmatpush1.msra.mxu0 0.0
      %1753 = vmatprep.subr.mxu0 0.0
      %1754 = vmatpush1.msra.mxu0 0.0
      %1755 = vmatprep.subr.mxu0 0.0
      %1756 = vmatpush1.msra.mxu0 0.0
      %1757 = vmatprep.subr.mxu0 0.0
      %1758 = vmatpush1.msra.mxu0 0.0
      %1759 = vmatprep.subr.mxu0 0.0
      %1760 = vmatpush1.msra.mxu0 0.0
      %1761 = vmatprep.mubr.f32.mxu0 0.0
      %1762 = vmatmul.mubr.f32.gmra.mrb[0].mxu0 %v306
      %v1763 = vpop.f32.mrb[0].mxu0
      %v1764 = vadd.f32 0.0, %v1763
      %v1765 = vpop.f32.mrb[0].mxu0
      %1766 = vdwg.mxu0
      %v1767 = vadd.f32 %v1696, %v1764
      %1768 = vst.msk [vmem:[%s1695] sm:$0x7f] %vm913, %v1767
      // Predicated region
      $region37: #{tpu_custom_call.1} parent=31 // pred_check
        %p1769 = pneg %p271
      $region38: #{tpu_custom_call.1} parent=31 // pred_check_branch
        %1771 = sbr.rel (%p1769) target = $region40
      $region39: #{tpu_custom_call.1} parent=31 // pred_region
        %v1772 = vld [vmem:[#allocation2] sm:$0x1]
        %v1774 = vrot.slane %v289, 4
        %vm1776 = vcmask 1043456
        %v1777 = vsel %vm1776, 0.0, %v1774
        %v1778 = vld [vmem:[#allocation3] sm:$0x7f]
        %1780 = vset.pattern.permute.xlu0 0
        %1781 = vperm.xlu0 %1780, %v1778
        %v1782 = vpop.permute.xlu0 %1781
        %vm1784 = vcmp.eq.f32.partialorder %v1772, 0.0
        %v1785 = vld [vmem:[%s269] sm:$0x7f]
        %v1786 = vsel %vm1784, 1, 0
        %v1787 = vlaneseq
        %v1788 = vshrl.u32 %v1787, 7
        %v1789 = vsub.s32 0, %v1788
        %v1790 = vrot.slane %v1786, %v1789
        %vm1791 = vcmp.eq.s32.totalorder %v1790, 1
        %v1792 = vsel %vm1791, %v1782, %v1785
        %vm1793 = vcmp.lt.f32.partialorder 0.0, %v1772
        %v1794 = vsel %vm1793, 1, 0
        %v1795 = vlaneseq
        %v1796 = vshrl.u32 %v1795, 7
        %v1797 = vsub.s32 0, %v1796
        %v1798 = vrot.slane %v1794, %v1797
        %vm1799 = vcmp.eq.s32.totalorder %v1798, 1
        %v1800 = vsel %vm1799, %v1785, %v1792
        %v1801 = vsub.f32 %v1800, %v1777
        %1802 = vst.msk [vmem:[%s269] sm:$0x7f] %vm913, %v1801
        %vm1803 = vcmp.lt.f32.partialorder 1.0, %v1772
        %v1804 = vld [vmem:[%s963] sm:$0x7f]
        %v1805 = vsel %vm1803, 1, 0
        %v1806 = vlaneseq
        %v1807 = vshrl.u32 %v1806, 7
        %v1808 = vsub.s32 0, %v1807
        %v1809 = vrot.slane %v1805, %v1808
        %vm1810 = vcmp.eq.s32.totalorder %v1809, 1
        %v1811 = vsel %vm1810, %v1804, %v1792
        %v1812 = vsub.f32 %v1811, %v1777
        %1813 = vst.msk [vmem:[%s963] sm:$0x7f] %vm913, %v1812
        %vm1814 = vcmp.lt.f32.partialorder 2.0, %v1772
        %v1815 = vld [vmem:[%s1085] sm:$0x7f]
        %v1816 = vsel %vm1814, 1, 0
        %v1817 = vlaneseq
        %v1818 = vshrl.u32 %v1817, 7
        %v1819 = vsub.s32 0, %v1818
        %v1820 = vrot.slane %v1816, %v1819
        %vm1821 = vcmp.eq.s32.totalorder %v1820, 1
        %v1822 = vsel %vm1821, %v1815, %v1792
        %v1823 = vsub.f32 %v1822, %v1777
        %1824 = vst.msk [vmem:[%s1085] sm:$0x7f] %vm913, %v1823
        %vm1825 = vcmp.lt.f32.partialorder 3.0, %v1772
        %v1826 = vld [vmem:[%s1207] sm:$0x7f]
        %v1827 = vsel %vm1825, 1, 0
        %v1828 = vlaneseq
        %v1829 = vshrl.u32 %v1828, 7
        %v1830 = vsub.s32 0, %v1829
        %v1831 = vrot.slane %v1827, %v1830
        %vm1832 = vcmp.eq.s32.totalorder %v1831, 1
        %v1833 = vsel %vm1832, %v1826, %v1792
        %v1834 = vsub.f32 %v1833, %v1777
        %1835 = vst.msk [vmem:[%s1207] sm:$0x7f] %vm913, %v1834
        %vm1836 = vcmp.lt.f32.partialorder 4.0, %v1772
        %v1837 = vld [vmem:[%s1329] sm:$0x7f]
        %v1838 = vsel %vm1836, 1, 0
        %v1839 = vlaneseq
        %v1840 = vshrl.u32 %v1839, 7
        %v1841 = vsub.s32 0, %v1840
        %v1842 = vrot.slane %v1838, %v1841
        %vm1843 = vcmp.eq.s32.totalorder %v1842, 1
        %v1844 = vsel %vm1843, %v1837, %v1792
        %v1845 = vsub.f32 %v1844, %v1777
        %1846 = vst.msk [vmem:[%s1329] sm:$0x7f] %vm913, %v1845
        %vm1847 = vcmp.lt.f32.partialorder 5.0, %v1772
        %v1848 = vld [vmem:[%s1451] sm:$0x7f]
        %v1849 = vsel %vm1847, 1, 0
        %v1850 = vlaneseq
        %v1851 = vshrl.u32 %v1850, 7
        %v1852 = vsub.s32 0, %v1851
        %v1853 = vrot.slane %v1849, %v1852
        %vm1854 = vcmp.eq.s32.totalorder %v1853, 1
        %v1855 = vsel %vm1854, %v1848, %v1792
        %v1856 = vsub.f32 %v1855, %v1777
        %1857 = vst.msk [vmem:[%s1451] sm:$0x7f] %vm913, %v1856
        %vm1858 = vcmp.lt.f32.partialorder 6.0, %v1772
        %v1859 = vld [vmem:[%s1573] sm:$0x7f]
        %v1860 = vsel %vm1858, 1, 0
        %v1861 = vlaneseq
        %v1862 = vshrl.u32 %v1861, 7
        %v1863 = vsub.s32 0, %v1862
        %v1864 = vrot.slane %v1860, %v1863
        %vm1865 = vcmp.eq.s32.totalorder %v1864, 1
        %v1866 = vsel %vm1865, %v1859, %v1792
        %v1867 = vsub.f32 %v1866, %v1777
        %1868 = vst.msk [vmem:[%s1573] sm:$0x7f] %vm913, %v1867
        %vm1869 = vcmp.lt.f32.partialorder 7.0, %v1772
        %v1870 = vld [vmem:[%s1695] sm:$0x7f]
        %v1871 = vsel %vm1869, 1, 0
        %v1872 = vlaneseq
        %v1873 = vshrl.u32 %v1872, 7
        %v1874 = vsub.s32 0, %v1873
        %v1875 = vrot.slane %v1871, %v1874
        %vm1876 = vcmp.eq.s32.totalorder %v1875, 1
        %v1877 = vsel %vm1876, %v1870, %v1792
        %v1878 = vsub.f32 %v1877, %v1777
        %1879 = vst.msk [vmem:[%s1695] sm:$0x7f] %vm913, %v1878
      $region40: #{tpu_custom_call.1} parent=31 // pred_fallthru
        _
      %p1880 = scmp.lt.s32.totalorder %s19, 1
      %s1881 = scalar_select %p1880, %s19, 1
      %p1882 = scmp.lt.s32.totalorder %s20, 0
      %s1883 = scalar_select %p1882, %s20, 0
      %s1884 = smul.addr %s1881, 8
      %s1885 = sadd.s32 %s1883, %s1884
      %s1886 = smul.addr %s1885, 8
      %s1887 = scalar_lea.vmem %s3, %s1886
      // Predicated region
      $region41: #{tpu_custom_call.1} parent=31 // pred_check
        %p1888 = pneg %p137
      $region42: #{tpu_custom_call.1} parent=31 // pred_check_branch
        %1890 = sbr.rel (%p1888) target = $region44
      $region43: #{tpu_custom_call.1} parent=31 // pred_region
        _
      $region44: #{tpu_custom_call.1} parent=31 // pred_fallthru
        _
    $region32: #{tpu_custom_call.1} parent=5 // pred_fallthru
      _
    %p1891 = scmp.le.s32.totalorder 2, %s9
    // Predicated region
    $region45: #{tpu_custom_call.1} parent=5 // pred_check
      %p1892 = pneg %p1891
    $region46: #{tpu_custom_call.1} parent=5 // pred_check_branch
      %1894 = sbr.rel (%p1892) target = $region48
    $region47: #{tpu_custom_call.1} parent=5 // pred_region
      %s1895 = ssub.s32 %s9, 2
      // Predicated region
      $region49: #{tpu_custom_call.1} parent=47 // pred_check
        %p1896 = pneg %p143
      $region50: #{tpu_custom_call.1} parent=47 // pred_check_branch
        %1898 = sbr.rel (%p1896) target = $region52
      $region51: #{tpu_custom_call.1} parent=47 // pred_region
        %p1899 = scmp.lt.s32.totalorder %s22, 1
        %s1900 = scalar_select %p1899, %s22, 1
        %p1901 = scmp.lt.s32.totalorder %s23, 0
        %s1902 = scalar_select %p1901, %s23, 0
        %s1903 = smul.addr %s1900, 8
        %s1904 = sadd.s32 %s1902, %s1903
        %s1905 = smul.addr %s1904, 8
        %s1906 = scalar_lea.vmem %s3, %s1905
      $region52: #{tpu_custom_call.1} parent=47 // pred_fallthru
        _
    $region48: #{tpu_custom_call.1} parent=5 // pred_fallthru
      _
  $region6: #{tpu_custom_call.1} parent=0 // loop_footer
    %s13 = sadd.s32 1, %s9
  $region7: #{tpu_custom_call.1} parent=0 // loop_footer_branch
    %8 = sbr.rel target = $region3
  $region8: #{tpu_custom_call.1} parent=0 // loop_exit
    _

</llo_original>
